<compile_context>
chip_gen: v6e
topology: v6e:2x2x1
jax: 0.10.0
libtpu: 0.0.40
codegen_flags: <defaults>
</compile_context>

<pallas_src>
import numpy as np
import jax
import jax.numpy as jnp
from jax.experimental import pallas as pl
from jax.experimental.pallas import tpu as pltpu

IN_FEATURES = 64 * 7 * 7      # 3136
HIDDEN_DIM = 32
NUM_ACTIONS = 15              # ProcGen action space
BATCH = 2

LANE = 128
N_PAD = LANE                  # logit lane dim padded once so output stores are lane-dense
NEG_INF = -1e30               # padded-lane logit value (softmax-safe)
BATCH_TILE = 128              # batch tile for the large-batch grid path


def _actor_kernel(x_ref, w1_ref, b1_ref, w2_ref, b2_ref, o_ref):
    # In-kernel f32 -> bf16 activation cast (VPU; avoids a separate XLA cast op and
    # an extra HBM round trip of x).  fc1 runs on the MXU with f32 accumulation.
    x_bf16 = x_ref[...].astype(jnp.bfloat16)
    h = jnp.dot(x_bf16, w1_ref[...], preferred_element_type=jnp.float32)
    h = jnp.maximum(h + b1_ref[...], 0.0)        # bias + ReLU in f32 (v5e VPU has no bf16)
    # actions head: (BT, H) @ (H, 128) f32 matmul, lane-dense output block (unmasked vst).
    # Lanes >= num_actions get 0 from w2 padding and NEG_INF from b2 padding, so the
    # padded logits are directly safe for downstream softmax / Categorical.
    o_ref[...] = (jnp.dot(h, w2_ref[...], preferred_element_type=jnp.float32)
                  + b2_ref[...])


def prepare_params(w1, b1, w2, b2):
    """One-time parameter packing (hoisted out of the per-call path).

    w1: (IN_FEATURES, H)   -- transposed vs. PyTorch's (H, IN_FEATURES)
    b1: (H,)
    w2: (H, num_actions)   -- transposed vs. PyTorch
    b2: (num_actions,)
    """
    H = w1.shape[1]
    n = w2.shape[1]
    w1_bf16 = jnp.asarray(w1, jnp.bfloat16)                  # halves the dominant DMA
    b1_2d = jnp.asarray(b1, jnp.float32).reshape(1, H)
    w2_p = jnp.zeros((H, N_PAD), jnp.float32).at[:, :n].set(jnp.asarray(w2, jnp.float32))
    # Padding lanes get NEG_INF bias so the padded logit block is softmax-safe as-is.
    b2_p = jnp.full((1, N_PAD), NEG_INF, jnp.float32).at[0, :n].set(
        jnp.asarray(b2, jnp.float32))
    return w1_bf16, b1_2d, w2_p, b2_p


def procgen_actor_forward(state_rep, params, num_actions=NUM_ACTIONS,
                          return_padded=False):
    """state_rep: (B, 3136) f32.

    Returns action logits of shape (B, num_actions), or the lane-dense padded
    (B, 128) block (padding lanes = -1e30) when return_padded=True so consumers
    can skip the slice entirely.
    """
    w1_bf16, b1_2d, w2_p, b2_p = params
    B, K = state_rep.shape
    assert K == IN_FEATURES
    H = w1_bf16.shape[1]

    x = state_rep.astype(jnp.float32)            # stays f32; bf16 cast happens in-kernel

    cost = pl.CostEstimate(
        flops=2 * B * K * H + 2 * B * H * N_PAD,
        transcendentals=0,
        bytes_accessed=(x.size * 4 + w1_bf16.size * 2 + b1_2d.size * 4
                        + w2_p.size * 4 + b2_p.size * 4 + B * N_PAD * 4),
    )
    out_shape = jax.ShapeDtypeStruct((B, N_PAD), jnp.float32)
    args = (x, w1_bf16, b1_2d, w2_p, b2_p)

    if B > BATCH_TILE and B % BATCH_TILE == 0:
        # Large-batch path: 1-D grid over batch tiles.  Weights map to the same
        # (0,0) block every step (resident); "parallel" lets v7x shard batch tiles
        # across its 2 TensorCores.  Footprint per step is ~1.8 MB << VMEM on all gens.
        out = pl.pallas_call(
            _actor_kernel,
            out_shape=out_shape,
            grid_spec=pltpu.PrefetchScalarGridSpec(
                num_scalar_prefetch=0,
                grid=(B // BATCH_TILE,),
                in_specs=[
                    pl.BlockSpec((BATCH_TILE, K), lambda i: (i, 0)),
                    pl.BlockSpec((K, H), lambda i: (0, 0)),
                    pl.BlockSpec((1, H), lambda i: (0, 0)),
                    pl.BlockSpec((H, N_PAD), lambda i: (0, 0)),
                    pl.BlockSpec((1, N_PAD), lambda i: (0, 0)),
                ],
                out_specs=pl.BlockSpec((BATCH_TILE, N_PAD), lambda i: (i, 0)),
            ),
            compiler_params=pltpu.CompilerParams(dimension_semantics=("parallel",)),
            cost_estimate=cost,
        )(*args)
    else:
        # Small-batch path: no grid, no K reduction — everything VMEM-resident.
        # (Per perf review: re-gridding at this size would be a regression.)
        out = pl.pallas_call(
            _actor_kernel,
            out_shape=out_shape,
            in_specs=[pl.BlockSpec(memory_space=pltpu.MemorySpace.VMEM)] * 5,
            out_specs=pl.BlockSpec(memory_space=pltpu.MemorySpace.VMEM),
            cost_estimate=cost,
        )(*args)

    if return_padded:
        return out                               # (B, 128), lanes >= num_actions = -1e30
    return out[:, :num_actions]                  # PyTorch-module semantics


def _init_params(key, hidden_dim, num_actions):
    # Deterministic init mimicking nn.Linear default: U(-1/sqrt(fan_in), 1/sqrt(fan_in))
    k1, k2, k3, k4 = jax.random.split(key, 4)
    bound1 = 1.0 / np.sqrt(IN_FEATURES)
    bound2 = 1.0 / np.sqrt(hidden_dim)
    w1 = jax.random.uniform(k1, (IN_FEATURES, hidden_dim), jnp.float32, -bound1, bound1)
    b1 = jax.random.uniform(k2, (hidden_dim,), jnp.float32, -bound1, bound1)
    w2 = jax.random.uniform(k3, (hidden_dim, num_actions), jnp.float32, -bound2, bound2)
    b2 = jax.random.uniform(k4, (num_actions,), jnp.float32, -bound2, bound2)
    return w1, b1, w2, b2


if __name__ == "__main__":
    key = jax.random.PRNGKey(0)
    k_x, k_p, k_big = jax.random.split(key, 3)

    w1, b1, w2, b2 = _init_params(k_p, HIDDEN_DIM, NUM_ACTIONS)
    params = prepare_params(w1, b1, w2, b2)       # one-time packing (bf16 w1, lane pad)

    def ref_forward(x):                           # pure-JAX f32 reference
        return jnp.maximum(x @ w1 + b1, 0.0) @ w2 + b2

    # --- small-batch path (B=2, no grid) ---
    state_rep = jax.random.normal(k_x, (BATCH, IN_FEATURES), jnp.float32)
    out = jax.block_until_ready(procgen_actor_forward(state_rep, params))
    assert out.shape == (BATCH, NUM_ACTIONS)
    # kernel feeds the fc1 MXU bf16 inputs -> relaxed tolerance vs f32 reference
    np.testing.assert_allclose(np.asarray(out), np.asarray(ref_forward(state_rep)),
                               rtol=2e-2, atol=2e-2)

    # --- padded-output variant: lanes >= num_actions are -1e30 (softmax-safe) ---
    out_pad = jax.block_until_ready(
        procgen_actor_forward(state_rep, params, return_padded=True))
    assert out_pad.shape == (BATCH, N_PAD)
    assert bool(jnp.all(out_pad[:, NUM_ACTIONS:] <= -1e29))
    np.testing.assert_allclose(np.asarray(out_pad[:, :NUM_ACTIONS]), np.asarray(out),
                               rtol=1e-6, atol=1e-6)

    # --- large-batch path (B=256, batch-tiled grid; parallel axis for v7x's 2 TCs) ---
    big = jax.random.normal(k_big, (2 * BATCH_TILE, IN_FEATURES), jnp.float32)
    out_big = jax.block_until_ready(procgen_actor_forward(big, params))
    assert out_big.shape == (2 * BATCH_TILE, NUM_ACTIONS)
    np.testing.assert_allclose(np.asarray(out_big), np.asarray(ref_forward(big)),
                               rtol=2e-2, atol=2e-2)

    print("KERNEL_OK")
</pallas_src>

<mosaic_0001>
module attributes {stable_mosaic.version = 11 : i64} {
  func.func @_actor_kernel(%arg0: memref<2x3136xf32, #tpu.memory_space<vmem>>, %arg1: memref<3136x32xbf16, #tpu.memory_space<vmem>>, %arg2: memref<1x32xf32, #tpu.memory_space<vmem>>, %arg3: memref<32x128xf32, #tpu.memory_space<vmem>>, %arg4: memref<1x128xf32, #tpu.memory_space<vmem>>, %arg5: memref<2x128xf32, #tpu.memory_space<vmem>>) attributes {dimension_semantics = [], scalar_prefetch = 0 : i64, scratch_operands = 0 : i64, tpu.core_type = #tpu.core_type<tc>} {
    %c0 = arith.constant 0 : index
    %c0_0 = arith.constant 0 : index
    %0 = vector.load %arg0[%c0, %c0_0] : memref<2x3136xf32, #tpu.memory_space<vmem>>, vector<2x3136xf32>
    %1 = arith.truncf %0 : vector<2x3136xf32> to vector<2x3136xbf16>
    %c0_1 = arith.constant 0 : index
    %c0_2 = arith.constant 0 : index
    %2 = vector.load %arg1[%c0_1, %c0_2] : memref<3136x32xbf16, #tpu.memory_space<vmem>>, vector<3136x32xbf16>
    %cst = arith.constant dense<0.000000e+00> : vector<2x32xf32>
    %3 = tpu.matmul %1, %2, %cst {dimension_numbers = #tpu.dot_dimension_numbers<[1], [0], [0], [1], [0, 0, 1, 1], [], []>} : vector<2x3136xbf16>, vector<3136x32xbf16>, vector<2x32xf32> -> vector<2x32xf32>
    %c0_3 = arith.constant 0 : index
    %c0_4 = arith.constant 0 : index
    %4 = vector.load %arg2[%c0_3, %c0_4] : memref<1x32xf32, #tpu.memory_space<vmem>>, vector<1x32xf32>
    %5 = vector.broadcast %4 : vector<1x32xf32> to vector<2x32xf32>
    %6 = arith.addf %3, %5 : vector<2x32xf32>
    %cst_5 = arith.constant 0.000000e+00 : f32
    %7 = vector.broadcast %cst_5 : f32 to vector<2x32xf32>
    %8 = arith.maximumf %6, %7 : vector<2x32xf32>
    %c0_6 = arith.constant 0 : index
    %c0_7 = arith.constant 0 : index
    %9 = vector.load %arg3[%c0_6, %c0_7] : memref<32x128xf32, #tpu.memory_space<vmem>>, vector<32x128xf32>
    %cst_8 = arith.constant dense<0.000000e+00> : vector<2x128xf32>
    %10 = tpu.matmul %8, %9, %cst_8 {dimension_numbers = #tpu.dot_dimension_numbers<[1], [0], [0], [1], [0, 0, 1, 1], [], []>} : vector<2x32xf32>, vector<32x128xf32>, vector<2x128xf32> -> vector<2x128xf32>
    %c0_9 = arith.constant 0 : index
    %c0_10 = arith.constant 0 : index
    %11 = vector.load %arg4[%c0_9, %c0_10] : memref<1x128xf32, #tpu.memory_space<vmem>>, vector<1x128xf32>
    %12 = vector.broadcast %11 : vector<1x128xf32> to vector<2x128xf32>
    %13 = arith.addf %10, %12 : vector<2x128xf32>
    %c0_11 = arith.constant 0 : index
    %c0_12 = arith.constant 0 : index
    %14 = vector.load %arg5[%c0_11, %c0_12] : memref<2x128xf32, #tpu.memory_space<vmem>>, vector<2x128xf32>
    tpu.vector_store %arg5[%c0_11, %c0_12], %13 {strides = array<i32>} : memref<2x128xf32, #tpu.memory_space<vmem>>, vector<2x128xf32>,
    return
  }
}

</mosaic_0001>

<llo_original>
// kernel: tpu_custom_call.1
$region0: #{tpu_custom_call.1}
  #allocation0 [shape = 'u32[]', space=smem, size = 0x4, offset = 0x4, fixed_abs, tag = 'smem constant byte address 0x4 - core index']
  #allocation1 [shape = 'u32[144,128]{1,0:T(1,128)}', space=vmem, size = 0x12000, scoped, tag = 'internal scratch']
  %s0 = inlined_call_operand.vmem [shape: f32[2,3136], index: 0, kind: input, shape index: {}]
  %s1 = inlined_call_operand.vmem [shape: bf16[3136,32], index: 1, kind: input, shape index: {}]
  %s2 = inlined_call_operand.vmem [shape: f32[1,32], index: 2, kind: input, shape index: {}]
  %s3 = inlined_call_operand.vmem [shape: f32[32,128], index: 3, kind: input, shape index: {}]
  %s4 = inlined_call_operand.vmem [shape: f32[1,128], index: 4, kind: input, shape index: {}]
  %s5 = inlined_call_operand.hbm [shape: f32[2,128], index: 5, kind: output, shape index: {}]
  %s6 = sld [smem:[#allocation0]]
  $region30: #{tpu_custom_call.1} parent=0
    _
  %s8 = ssub.s32 1, %s6
  %s9 = scalar_select 0, %s8, %s6
  $region1: #{tpu_custom_call.1} parent=0
    #allocation2 [shape = 'u8[1024]{0}', space=vmem, size = 0x400, scoped, tag = 'output window, operand 0, single buffered']
    #allocation3 [shape = 's32[1]{0}', space=sflag, size = 0x4, scoped, tag = 'scoped memory for tpu_custom_call.1']
    %10 = vsyncpa [#allocation3], 0
    // Predicated region
    $region2: #{tpu_custom_call.1} parent=1 // pred_check
      _
    $region3: #{tpu_custom_call.1} parent=1 // pred_check_branch
      %12 = sbr.rel (0) target = $region5
    $region4: #{tpu_custom_call.1} parent=1 // pred_region
      _
    $region5: #{tpu_custom_call.1} parent=1 // pred_fallthru
      _
    // Predicated region
    $region6: #{tpu_custom_call.1} parent=1 // pred_check
      _
    $region7: #{tpu_custom_call.1} parent=1 // pred_check_branch
      %14 = sbr.rel (0) target = $region9
    $region8: #{tpu_custom_call.1} parent=1 // pred_region
      _
    $region9: #{tpu_custom_call.1} parent=1 // pred_fallthru
      _
    // Predicated region
    $region10: #{tpu_custom_call.1} parent=1 // pred_check
      _
    $region11: #{tpu_custom_call.1} parent=1 // pred_check_branch
      %16 = sbr.rel (0) target = $region13
    $region12: #{tpu_custom_call.1} parent=1 // pred_region
      _
    $region13: #{tpu_custom_call.1} parent=1 // pred_fallthru
      _
    // Predicated region
    $region14: #{tpu_custom_call.1} parent=1 // pred_check
      _
    $region15: #{tpu_custom_call.1} parent=1 // pred_check_branch
      %18 = sbr.rel (0) target = $region17
    $region16: #{tpu_custom_call.1} parent=1 // pred_region
      _
    $region17: #{tpu_custom_call.1} parent=1 // pred_fallthru
      _
    // Predicated region
    $region18: #{tpu_custom_call.1} parent=1 // pred_check
      _
    $region19: #{tpu_custom_call.1} parent=1 // pred_check_branch
      %20 = sbr.rel (0) target = $region21
    $region20: #{tpu_custom_call.1} parent=1 // pred_region
      _
    $region21: #{tpu_custom_call.1} parent=1 // pred_fallthru
      _
    %v22 = vld [vmem:[%s0] sm:$0xff]
    %v23 = vld [vmem:[%s0 + $0x8] sm:$0xff]
    %v24 = vld [vmem:[%s0 + $0x10] sm:$0xff]
    %v25 = vld [vmem:[%s0 + $0x18] sm:$0xff]
    %v26 = vld [vmem:[%s0 + $0x20] sm:$0xff]
    %v27 = vld [vmem:[%s0 + $0x28] sm:$0xff]
    %v28 = vld [vmem:[%s0 + $0x30] sm:$0x3]
    %v36 = vcombine.high %v22, %v22
    %v38 = vunpack.c.l.s4 1983009808
    %v39 = vunpack.c.0.s8 %v38
    %v40 = vlaneseq
    %v41 = vshrl.u32 %v40, 7
    %v42 = vsub.s32 %v39, %v41
    %v43 = vrot.slane %v22, %v42
    %v45 = vunpack.c.l.s4 1983009808
    %v46 = vunpack.c.0.s8 %v45
    %v47 = vlaneseq
    %v48 = vshrl.u32 %v47, 7
    %v49 = vsub.s32 %v46, %v48
    %v50 = vrot.slane %v36, %v49
    %v51 = vcombine.high %v43, %v43
    %v52 = vcombine.high %v50, %v50
    %v53 = vcombine.high %v23, %v23
    %v55 = vunpack.c.l.s4 1983009808
    %v56 = vunpack.c.0.s8 %v55
    %v57 = vlaneseq
    %v58 = vshrl.u32 %v57, 7
    %v59 = vsub.s32 %v56, %v58
    %v60 = vrot.slane %v23, %v59
    %v62 = vunpack.c.l.s4 1983009808
    %v63 = vunpack.c.0.s8 %v62
    %v64 = vlaneseq
    %v65 = vshrl.u32 %v64, 7
    %v66 = vsub.s32 %v63, %v65
    %v67 = vrot.slane %v53, %v66
    %v68 = vcombine.high %v60, %v60
    %v69 = vcombine.high %v67, %v67
    %v70 = vcombine.high %v24, %v24
    %v72 = vunpack.c.l.s4 1983009808
    %v73 = vunpack.c.0.s8 %v72
    %v74 = vlaneseq
    %v75 = vshrl.u32 %v74, 7
    %v76 = vsub.s32 %v73, %v75
    %v77 = vrot.slane %v24, %v76
    %v79 = vunpack.c.l.s4 1983009808
    %v80 = vunpack.c.0.s8 %v79
    %v81 = vlaneseq
    %v82 = vshrl.u32 %v81, 7
    %v83 = vsub.s32 %v80, %v82
    %v84 = vrot.slane %v70, %v83
    %v85 = vcombine.high %v77, %v77
    %v86 = vcombine.high %v84, %v84
    %v87 = vcombine.high %v25, %v25
    %v89 = vunpack.c.l.s4 1983009808
    %v90 = vunpack.c.0.s8 %v89
    %v91 = vlaneseq
    %v92 = vshrl.u32 %v91, 7
    %v93 = vsub.s32 %v90, %v92
    %v94 = vrot.slane %v25, %v93
    %v96 = vunpack.c.l.s4 1983009808
    %v97 = vunpack.c.0.s8 %v96
    %v98 = vlaneseq
    %v99 = vshrl.u32 %v98, 7
    %v100 = vsub.s32 %v97, %v99
    %v101 = vrot.slane %v87, %v100
    %v102 = vcombine.high %v94, %v94
    %v103 = vcombine.high %v101, %v101
    %v104 = vcombine.high %v26, %v26
    %v106 = vunpack.c.l.s4 1983009808
    %v107 = vunpack.c.0.s8 %v106
    %v108 = vlaneseq
    %v109 = vshrl.u32 %v108, 7
    %v110 = vsub.s32 %v107, %v109
    %v111 = vrot.slane %v26, %v110
    %v113 = vunpack.c.l.s4 1983009808
    %v114 = vunpack.c.0.s8 %v113
    %v115 = vlaneseq
    %v116 = vshrl.u32 %v115, 7
    %v117 = vsub.s32 %v114, %v116
    %v118 = vrot.slane %v104, %v117
    %v119 = vcombine.high %v111, %v111
    %v120 = vcombine.high %v118, %v118
    %v121 = vcombine.high %v27, %v27
    %v123 = vunpack.c.l.s4 1983009808
    %v124 = vunpack.c.0.s8 %v123
    %v125 = vlaneseq
    %v126 = vshrl.u32 %v125, 7
    %v127 = vsub.s32 %v124, %v126
    %v128 = vrot.slane %v27, %v127
    %v130 = vunpack.c.l.s4 1983009808
    %v131 = vunpack.c.0.s8 %v130
    %v132 = vlaneseq
    %v133 = vshrl.u32 %v132, 7
    %v134 = vsub.s32 %v131, %v133
    %v135 = vrot.slane %v121, %v134
    %v136 = vcombine.high %v128, %v128
    %v137 = vcombine.high %v135, %v135
    %v139 = vunpack.c.l.s4 1983009808
    %v140 = vunpack.c.0.s8 %v139
    %v141 = vlaneseq
    %v142 = vshrl.u32 %v141, 7
    %v143 = vsub.s32 %v140, %v142
    %v144 = vrot.slane %v28, %v143
    %v170 = vpack.c.bf16 %v43, %v43
    %v171 = vpack.c.bf16 %v51, %v51
    %v172 = vpack.c.bf16 %v50, %v50
    %v173 = vpack.c.bf16 %v52, %v52
    %v174 = vpack.c.bf16 %v60, %v60
    %v175 = vpack.c.bf16 %v68, %v68
    %v176 = vpack.c.bf16 %v67, %v67
    %v177 = vpack.c.bf16 %v69, %v69
    %v178 = vpack.c.bf16 %v77, %v77
    %v179 = vpack.c.bf16 %v85, %v85
    %v180 = vpack.c.bf16 %v84, %v84
    %v181 = vpack.c.bf16 %v86, %v86
    %v182 = vpack.c.bf16 %v94, %v94
    %v183 = vpack.c.bf16 %v102, %v102
    %v184 = vpack.c.bf16 %v101, %v101
    %v185 = vpack.c.bf16 %v103, %v103
    %v186 = vpack.c.bf16 %v111, %v111
    %v187 = vpack.c.bf16 %v119, %v119
    %v188 = vpack.c.bf16 %v118, %v118
    %v189 = vpack.c.bf16 %v120, %v120
    %v190 = vpack.c.bf16 %v128, %v128
    %v191 = vpack.c.bf16 %v136, %v136
    %v192 = vpack.c.bf16 %v135, %v135
    %v193 = vpack.c.bf16 %v137, %v137
    %v194 = vpack.c.bf16 %v144, %v144
    %v195 = vld [vmem:[%s1] sm:$0xf]
    %v196 = vld [vmem:[%s1 + $0x4] sm:$0xf]
    %v197 = vld [vmem:[%s1 + $0x8] sm:$0xf]
    %v198 = vld [vmem:[%s1 + $0xc] sm:$0xf]
    %v199 = vld [vmem:[%s1 + $0x10] sm:$0xf]
    %v200 = vld [vmem:[%s1 + $0x14] sm:$0xf]
    %v201 = vld [vmem:[%s1 + $0x18] sm:$0xf]
    %v202 = vld [vmem:[%s1 + $0x1c] sm:$0xf]
    %v203 = vld [vmem:[%s1 + $0x20] sm:$0xf]
    %v204 = vld [vmem:[%s1 + $0x24] sm:$0xf]
    %v205 = vld [vmem:[%s1 + $0x28] sm:$0xf]
    %v206 = vld [vmem:[%s1 + $0x2c] sm:$0xf]
    %v207 = vld [vmem:[%s1 + $0x30] sm:$0xf]
    %v208 = vld [vmem:[%s1 + $0x34] sm:$0xf]
    %v209 = vld [vmem:[%s1 + $0x38] sm:$0xf]
    %v210 = vld [vmem:[%s1 + $0x3c] sm:$0xf]
    %v211 = vld [vmem:[%s1 + $0x40] sm:$0xf]
    %v212 = vld [vmem:[%s1 + $0x44] sm:$0xf]
    %v213 = vld [vmem:[%s1 + $0x48] sm:$0xf]
    %v214 = vld [vmem:[%s1 + $0x4c] sm:$0xf]
    %v215 = vld [vmem:[%s1 + $0x50] sm:$0xf]
    %v216 = vld [vmem:[%s1 + $0x54] sm:$0xf]
    %v217 = vld [vmem:[%s1 + $0x58] sm:$0xf]
    %v218 = vld [vmem:[%s1 + $0x5c] sm:$0xf]
    %v219 = vld [vmem:[%s1 + $0x60] sm:$0xf]
    %v220 = vld [vmem:[%s1 + $0x64] sm:$0xf]
    %v221 = vld [vmem:[%s1 + $0x68] sm:$0xf]
    %v222 = vld [vmem:[%s1 + $0x6c] sm:$0xf]
    %v223 = vld [vmem:[%s1 + $0x70] sm:$0xf]
    %v224 = vld [vmem:[%s1 + $0x74] sm:$0xf]
    %v225 = vld [vmem:[%s1 + $0x78] sm:$0xf]
    %v226 = vld [vmem:[%s1 + $0x7c] sm:$0xf]
    %v227 = vld [vmem:[%s1 + $0x80] sm:$0xf]
    %v228 = vld [vmem:[%s1 + $0x84] sm:$0xf]
    %v229 = vld [vmem:[%s1 + $0x88] sm:$0xf]
    %v230 = vld [vmem:[%s1 + $0x8c] sm:$0xf]
    %v231 = vld [vmem:[%s1 + $0x90] sm:$0xf]
    %v232 = vld [vmem:[%s1 + $0x94] sm:$0xf]
    %v233 = vld [vmem:[%s1 + $0x98] sm:$0xf]
    %v234 = vld [vmem:[%s1 + $0x9c] sm:$0xf]
    %v235 = vld [vmem:[%s1 + $0xa0] sm:$0xf]
    %v236 = vld [vmem:[%s1 + $0xa4] sm:$0xf]
    %v237 = vld [vmem:[%s1 + $0xa8] sm:$0xf]
    %v238 = vld [vmem:[%s1 + $0xac] sm:$0xf]
    %v239 = vld [vmem:[%s1 + $0xb0] sm:$0xf]
    %v240 = vld [vmem:[%s1 + $0xb4] sm:$0xf]
    %v241 = vld [vmem:[%s1 + $0xb8] sm:$0xf]
    %v242 = vld [vmem:[%s1 + $0xbc] sm:$0xf]
    %v243 = vld [vmem:[%s1 + $0xc0] sm:$0xf]
    %v244 = vld [vmem:[%s1 + $0xc4] sm:$0xf]
    %v245 = vld [vmem:[%s1 + $0xc8] sm:$0xf]
    %v246 = vld [vmem:[%s1 + $0xcc] sm:$0xf]
    %v247 = vld [vmem:[%s1 + $0xd0] sm:$0xf]
    %v248 = vld [vmem:[%s1 + $0xd4] sm:$0xf]
    %v249 = vld [vmem:[%s1 + $0xd8] sm:$0xf]
    %v250 = vld [vmem:[%s1 + $0xdc] sm:$0xf]
    %v251 = vld [vmem:[%s1 + $0xe0] sm:$0xf]
    %v252 = vld [vmem:[%s1 + $0xe4] sm:$0xf]
    %v253 = vld [vmem:[%s1 + $0xe8] sm:$0xf]
    %v254 = vld [vmem:[%s1 + $0xec] sm:$0xf]
    %v255 = vld [vmem:[%s1 + $0xf0] sm:$0xf]
    %v256 = vld [vmem:[%s1 + $0xf4] sm:$0xf]
    %v257 = vld [vmem:[%s1 + $0xf8] sm:$0xf]
    %v258 = vld [vmem:[%s1 + $0xfc] sm:$0xf]
    %v259 = vld [vmem:[%s1 + $0x100] sm:$0xf]
    %v260 = vld [vmem:[%s1 + $0x104] sm:$0xf]
    %v261 = vld [vmem:[%s1 + $0x108] sm:$0xf]
    %v262 = vld [vmem:[%s1 + $0x10c] sm:$0xf]
    %v263 = vld [vmem:[%s1 + $0x110] sm:$0xf]
    %v264 = vld [vmem:[%s1 + $0x114] sm:$0xf]
    %v265 = vld [vmem:[%s1 + $0x118] sm:$0xf]
    %v266 = vld [vmem:[%s1 + $0x11c] sm:$0xf]
    %v267 = vld [vmem:[%s1 + $0x120] sm:$0xf]
    %v268 = vld [vmem:[%s1 + $0x124] sm:$0xf]
    %v269 = vld [vmem:[%s1 + $0x128] sm:$0xf]
    %v270 = vld [vmem:[%s1 + $0x12c] sm:$0xf]
    %v271 = vld [vmem:[%s1 + $0x130] sm:$0xf]
    %v272 = vld [vmem:[%s1 + $0x134] sm:$0xf]
    %v273 = vld [vmem:[%s1 + $0x138] sm:$0xf]
    %v274 = vld [vmem:[%s1 + $0x13c] sm:$0xf]
    %v275 = vld [vmem:[%s1 + $0x140] sm:$0xf]
    %v276 = vld [vmem:[%s1 + $0x144] sm:$0xf]
    %v277 = vld [vmem:[%s1 + $0x148] sm:$0xf]
    %v278 = vld [vmem:[%s1 + $0x14c] sm:$0xf]
    %v279 = vld [vmem:[%s1 + $0x150] sm:$0xf]
    %v280 = vld [vmem:[%s1 + $0x154] sm:$0xf]
    %v281 = vld [vmem:[%s1 + $0x158] sm:$0xf]
    %v282 = vld [vmem:[%s1 + $0x15c] sm:$0xf]
    %v283 = vld [vmem:[%s1 + $0x160] sm:$0xf]
    %v284 = vld [vmem:[%s1 + $0x164] sm:$0xf]
    %v285 = vld [vmem:[%s1 + $0x168] sm:$0xf]
    %v286 = vld [vmem:[%s1 + $0x16c] sm:$0xf]
    %v287 = vld [vmem:[%s1 + $0x170] sm:$0xf]
    %v288 = vld [vmem:[%s1 + $0x174] sm:$0xf]
    %v289 = vld [vmem:[%s1 + $0x178] sm:$0xf]
    %v290 = vld [vmem:[%s1 + $0x17c] sm:$0xf]
    %v291 = vld [vmem:[%s1 + $0x180] sm:$0xf]
    %v292 = vld [vmem:[%s1 + $0x184] sm:$0xf]
    %v293 = vld [vmem:[%s1 + $0x188] sm:$0xf]
    %v294 = vld [vmem:[%s1 + $0x18c] sm:$0xf]
    %v295 = vld [vmem:[%s1 + $0x190] sm:$0xf]
    %v296 = vld [vmem:[%s1 + $0x194] sm:$0xf]
    %v297 = vld [vmem:[%s1 + $0x198] sm:$0xf]
    %v298 = vld [vmem:[%s1 + $0x19c] sm:$0xf]
    %v299 = vld [vmem:[%s1 + $0x1a0] sm:$0xf]
    %v300 = vld [vmem:[%s1 + $0x1a4] sm:$0xf]
    %v301 = vld [vmem:[%s1 + $0x1a8] sm:$0xf]
    %v302 = vld [vmem:[%s1 + $0x1ac] sm:$0xf]
    %v303 = vld [vmem:[%s1 + $0x1b0] sm:$0xf]
    %v304 = vld [vmem:[%s1 + $0x1b4] sm:$0xf]
    %v305 = vld [vmem:[%s1 + $0x1b8] sm:$0xf]
    %v306 = vld [vmem:[%s1 + $0x1bc] sm:$0xf]
    %v307 = vld [vmem:[%s1 + $0x1c0] sm:$0xf]
    %v308 = vld [vmem:[%s1 + $0x1c4] sm:$0xf]
    %v309 = vld [vmem:[%s1 + $0x1c8] sm:$0xf]
    %v310 = vld [vmem:[%s1 + $0x1cc] sm:$0xf]
    %v311 = vld [vmem:[%s1 + $0x1d0] sm:$0xf]
    %v312 = vld [vmem:[%s1 + $0x1d4] sm:$0xf]
    %v313 = vld [vmem:[%s1 + $0x1d8] sm:$0xf]
    %v314 = vld [vmem:[%s1 + $0x1dc] sm:$0xf]
    %v315 = vld [vmem:[%s1 + $0x1e0] sm:$0xf]
    %v316 = vld [vmem:[%s1 + $0x1e4] sm:$0xf]
    %v317 = vld [vmem:[%s1 + $0x1e8] sm:$0xf]
    %v318 = vld [vmem:[%s1 + $0x1ec] sm:$0xf]
    %v319 = vld [vmem:[%s1 + $0x1f0] sm:$0xf]
    %v320 = vld [vmem:[%s1 + $0x1f4] sm:$0xf]
    %v321 = vld [vmem:[%s1 + $0x1f8] sm:$0xf]
    %v322 = vld [vmem:[%s1 + $0x1fc] sm:$0xf]
    %v323 = vld [vmem:[%s1 + $0x200] sm:$0xf]
    %v324 = vld [vmem:[%s1 + $0x204] sm:$0xf]
    %v325 = vld [vmem:[%s1 + $0x208] sm:$0xf]
    %v326 = vld [vmem:[%s1 + $0x20c] sm:$0xf]
    %v327 = vld [vmem:[%s1 + $0x210] sm:$0xf]
    %v328 = vld [vmem:[%s1 + $0x214] sm:$0xf]
    %v329 = vld [vmem:[%s1 + $0x218] sm:$0xf]
    %v330 = vld [vmem:[%s1 + $0x21c] sm:$0xf]
    %v331 = vld [vmem:[%s1 + $0x220] sm:$0xf]
    %v332 = vld [vmem:[%s1 + $0x224] sm:$0xf]
    %v333 = vld [vmem:[%s1 + $0x228] sm:$0xf]
    %v334 = vld [vmem:[%s1 + $0x22c] sm:$0xf]
    %v335 = vld [vmem:[%s1 + $0x230] sm:$0xf]
    %v336 = vld [vmem:[%s1 + $0x234] sm:$0xf]
    %v337 = vld [vmem:[%s1 + $0x238] sm:$0xf]
    %v338 = vld [vmem:[%s1 + $0x23c] sm:$0xf]
    %v339 = vld [vmem:[%s1 + $0x240] sm:$0xf]
    %v340 = vld [vmem:[%s1 + $0x244] sm:$0xf]
    %v341 = vld [vmem:[%s1 + $0x248] sm:$0xf]
    %v342 = vld [vmem:[%s1 + $0x24c] sm:$0xf]
    %v343 = vld [vmem:[%s1 + $0x250] sm:$0xf]
    %v344 = vld [vmem:[%s1 + $0x254] sm:$0xf]
    %v345 = vld [vmem:[%s1 + $0x258] sm:$0xf]
    %v346 = vld [vmem:[%s1 + $0x25c] sm:$0xf]
    %v347 = vld [vmem:[%s1 + $0x260] sm:$0xf]
    %v348 = vld [vmem:[%s1 + $0x264] sm:$0xf]
    %v349 = vld [vmem:[%s1 + $0x268] sm:$0xf]
    %v350 = vld [vmem:[%s1 + $0x26c] sm:$0xf]
    %v351 = vld [vmem:[%s1 + $0x270] sm:$0xf]
    %v352 = vld [vmem:[%s1 + $0x274] sm:$0xf]
    %v353 = vld [vmem:[%s1 + $0x278] sm:$0xf]
    %v354 = vld [vmem:[%s1 + $0x27c] sm:$0xf]
    %v355 = vld [vmem:[%s1 + $0x280] sm:$0xf]
    %v356 = vld [vmem:[%s1 + $0x284] sm:$0xf]
    %v357 = vld [vmem:[%s1 + $0x288] sm:$0xf]
    %v358 = vld [vmem:[%s1 + $0x28c] sm:$0xf]
    %v359 = vld [vmem:[%s1 + $0x290] sm:$0xf]
    %v360 = vld [vmem:[%s1 + $0x294] sm:$0xf]
    %v361 = vld [vmem:[%s1 + $0x298] sm:$0xf]
    %v362 = vld [vmem:[%s1 + $0x29c] sm:$0xf]
    %v363 = vld [vmem:[%s1 + $0x2a0] sm:$0xf]
    %v364 = vld [vmem:[%s1 + $0x2a4] sm:$0xf]
    %v365 = vld [vmem:[%s1 + $0x2a8] sm:$0xf]
    %v366 = vld [vmem:[%s1 + $0x2ac] sm:$0xf]
    %v367 = vld [vmem:[%s1 + $0x2b0] sm:$0xf]
    %v368 = vld [vmem:[%s1 + $0x2b4] sm:$0xf]
    %v369 = vld [vmem:[%s1 + $0x2b8] sm:$0xf]
    %v370 = vld [vmem:[%s1 + $0x2bc] sm:$0xf]
    %v371 = vld [vmem:[%s1 + $0x2c0] sm:$0xf]
    %v372 = vld [vmem:[%s1 + $0x2c4] sm:$0xf]
    %v373 = vld [vmem:[%s1 + $0x2c8] sm:$0xf]
    %v374 = vld [vmem:[%s1 + $0x2cc] sm:$0xf]
    %v375 = vld [vmem:[%s1 + $0x2d0] sm:$0xf]
    %v376 = vld [vmem:[%s1 + $0x2d4] sm:$0xf]
    %v377 = vld [vmem:[%s1 + $0x2d8] sm:$0xf]
    %v378 = vld [vmem:[%s1 + $0x2dc] sm:$0xf]
    %v379 = vld [vmem:[%s1 + $0x2e0] sm:$0xf]
    %v380 = vld [vmem:[%s1 + $0x2e4] sm:$0xf]
    %v381 = vld [vmem:[%s1 + $0x2e8] sm:$0xf]
    %v382 = vld [vmem:[%s1 + $0x2ec] sm:$0xf]
    %v383 = vld [vmem:[%s1 + $0x2f0] sm:$0xf]
    %v384 = vld [vmem:[%s1 + $0x2f4] sm:$0xf]
    %v385 = vld [vmem:[%s1 + $0x2f8] sm:$0xf]
    %v386 = vld [vmem:[%s1 + $0x2fc] sm:$0xf]
    %v387 = vld [vmem:[%s1 + $0x300] sm:$0xf]
    %v388 = vld [vmem:[%s1 + $0x304] sm:$0xf]
    %v389 = vld [vmem:[%s1 + $0x308] sm:$0xf]
    %v390 = vld [vmem:[%s1 + $0x30c] sm:$0xf]
    %v391 = vld [vmem:[%s1 + $0x310] sm:$0xf]
    %v392 = vld [vmem:[%s1 + $0x314] sm:$0xf]
    %v393 = vld [vmem:[%s1 + $0x318] sm:$0xf]
    %v394 = vld [vmem:[%s1 + $0x31c] sm:$0xf]
    %v395 = vld [vmem:[%s1 + $0x320] sm:$0xf]
    %v396 = vld [vmem:[%s1 + $0x324] sm:$0xf]
    %v397 = vld [vmem:[%s1 + $0x328] sm:$0xf]
    %v398 = vld [vmem:[%s1 + $0x32c] sm:$0xf]
    %v399 = vld [vmem:[%s1 + $0x330] sm:$0xf]
    %v400 = vld [vmem:[%s1 + $0x334] sm:$0xf]
    %v401 = vld [vmem:[%s1 + $0x338] sm:$0xf]
    %v402 = vld [vmem:[%s1 + $0x33c] sm:$0xf]
    %v403 = vld [vmem:[%s1 + $0x340] sm:$0xf]
    %v404 = vld [vmem:[%s1 + $0x344] sm:$0xf]
    %v405 = vld [vmem:[%s1 + $0x348] sm:$0xf]
    %v406 = vld [vmem:[%s1 + $0x34c] sm:$0xf]
    %v407 = vld [vmem:[%s1 + $0x350] sm:$0xf]
    %v408 = vld [vmem:[%s1 + $0x354] sm:$0xf]
    %v409 = vld [vmem:[%s1 + $0x358] sm:$0xf]
    %v410 = vld [vmem:[%s1 + $0x35c] sm:$0xf]
    %v411 = vld [vmem:[%s1 + $0x360] sm:$0xf]
    %v412 = vld [vmem:[%s1 + $0x364] sm:$0xf]
    %v413 = vld [vmem:[%s1 + $0x368] sm:$0xf]
    %v414 = vld [vmem:[%s1 + $0x36c] sm:$0xf]
    %v415 = vld [vmem:[%s1 + $0x370] sm:$0xf]
    %v416 = vld [vmem:[%s1 + $0x374] sm:$0xf]
    %v417 = vld [vmem:[%s1 + $0x378] sm:$0xf]
    %v418 = vld [vmem:[%s1 + $0x37c] sm:$0xf]
    %v419 = vld [vmem:[%s1 + $0x380] sm:$0xf]
    %v420 = vld [vmem:[%s1 + $0x384] sm:$0xf]
    %v421 = vld [vmem:[%s1 + $0x388] sm:$0xf]
    %v422 = vld [vmem:[%s1 + $0x38c] sm:$0xf]
    %v423 = vld [vmem:[%s1 + $0x390] sm:$0xf]
    %v424 = vld [vmem:[%s1 + $0x394] sm:$0xf]
    %v425 = vld [vmem:[%s1 + $0x398] sm:$0xf]
    %v426 = vld [vmem:[%s1 + $0x39c] sm:$0xf]
    %v427 = vld [vmem:[%s1 + $0x3a0] sm:$0xf]
    %v428 = vld [vmem:[%s1 + $0x3a4] sm:$0xf]
    %v429 = vld [vmem:[%s1 + $0x3a8] sm:$0xf]
    %v430 = vld [vmem:[%s1 + $0x3ac] sm:$0xf]
    %v431 = vld [vmem:[%s1 + $0x3b0] sm:$0xf]
    %v432 = vld [vmem:[%s1 + $0x3b4] sm:$0xf]
    %v433 = vld [vmem:[%s1 + $0x3b8] sm:$0xf]
    %v434 = vld [vmem:[%s1 + $0x3bc] sm:$0xf]
    %v435 = vld [vmem:[%s1 + $0x3c0] sm:$0xf]
    %v436 = vld [vmem:[%s1 + $0x3c4] sm:$0xf]
    %v437 = vld [vmem:[%s1 + $0x3c8] sm:$0xf]
    %v438 = vld [vmem:[%s1 + $0x3cc] sm:$0xf]
    %v439 = vld [vmem:[%s1 + $0x3d0] sm:$0xf]
    %v440 = vld [vmem:[%s1 + $0x3d4] sm:$0xf]
    %v441 = vld [vmem:[%s1 + $0x3d8] sm:$0xf]
    %v442 = vld [vmem:[%s1 + $0x3dc] sm:$0xf]
    %v443 = vld [vmem:[%s1 + $0x3e0] sm:$0xf]
    %v444 = vld [vmem:[%s1 + $0x3e4] sm:$0xf]
    %v445 = vld [vmem:[%s1 + $0x3e8] sm:$0xf]
    %v446 = vld [vmem:[%s1 + $0x3ec] sm:$0xf]
    %v447 = vld [vmem:[%s1 + $0x3f0] sm:$0xf]
    %v448 = vld [vmem:[%s1 + $0x3f4] sm:$0xf]
    %v449 = vld [vmem:[%s1 + $0x3f8] sm:$0xf]
    %v450 = vld [vmem:[%s1 + $0x3fc] sm:$0xf]
    %v451 = vld [vmem:[%s1 + $0x400] sm:$0xf]
    %v452 = vld [vmem:[%s1 + $0x404] sm:$0xf]
    %v453 = vld [vmem:[%s1 + $0x408] sm:$0xf]
    %v454 = vld [vmem:[%s1 + $0x40c] sm:$0xf]
    %v455 = vld [vmem:[%s1 + $0x410] sm:$0xf]
    %v456 = vld [vmem:[%s1 + $0x414] sm:$0xf]
    %v457 = vld [vmem:[%s1 + $0x418] sm:$0xf]
    %v458 = vld [vmem:[%s1 + $0x41c] sm:$0xf]
    %v459 = vld [vmem:[%s1 + $0x420] sm:$0xf]
    %v460 = vld [vmem:[%s1 + $0x424] sm:$0xf]
    %v461 = vld [vmem:[%s1 + $0x428] sm:$0xf]
    %v462 = vld [vmem:[%s1 + $0x42c] sm:$0xf]
    %v463 = vld [vmem:[%s1 + $0x430] sm:$0xf]
    %v464 = vld [vmem:[%s1 + $0x434] sm:$0xf]
    %v465 = vld [vmem:[%s1 + $0x438] sm:$0xf]
    %v466 = vld [vmem:[%s1 + $0x43c] sm:$0xf]
    %v467 = vld [vmem:[%s1 + $0x440] sm:$0xf]
    %v468 = vld [vmem:[%s1 + $0x444] sm:$0xf]
    %v469 = vld [vmem:[%s1 + $0x448] sm:$0xf]
    %v470 = vld [vmem:[%s1 + $0x44c] sm:$0xf]
    %v471 = vld [vmem:[%s1 + $0x450] sm:$0xf]
    %v472 = vld [vmem:[%s1 + $0x454] sm:$0xf]
    %v473 = vld [vmem:[%s1 + $0x458] sm:$0xf]
    %v474 = vld [vmem:[%s1 + $0x45c] sm:$0xf]
    %v475 = vld [vmem:[%s1 + $0x460] sm:$0xf]
    %v476 = vld [vmem:[%s1 + $0x464] sm:$0xf]
    %v477 = vld [vmem:[%s1 + $0x468] sm:$0xf]
    %v478 = vld [vmem:[%s1 + $0x46c] sm:$0xf]
    %v479 = vld [vmem:[%s1 + $0x470] sm:$0xf]
    %v480 = vld [vmem:[%s1 + $0x474] sm:$0xf]
    %v481 = vld [vmem:[%s1 + $0x478] sm:$0xf]
    %v482 = vld [vmem:[%s1 + $0x47c] sm:$0xf]
    %v483 = vld [vmem:[%s1 + $0x480] sm:$0xf]
    %v484 = vld [vmem:[%s1 + $0x484] sm:$0xf]
    %v485 = vld [vmem:[%s1 + $0x488] sm:$0xf]
    %v486 = vld [vmem:[%s1 + $0x48c] sm:$0xf]
    %v487 = vld [vmem:[%s1 + $0x490] sm:$0xf]
    %v488 = vld [vmem:[%s1 + $0x494] sm:$0xf]
    %v489 = vld [vmem:[%s1 + $0x498] sm:$0xf]
    %v490 = vld [vmem:[%s1 + $0x49c] sm:$0xf]
    %v491 = vld [vmem:[%s1 + $0x4a0] sm:$0xf]
    %v492 = vld [vmem:[%s1 + $0x4a4] sm:$0xf]
    %v493 = vld [vmem:[%s1 + $0x4a8] sm:$0xf]
    %v494 = vld [vmem:[%s1 + $0x4ac] sm:$0xf]
    %v495 = vld [vmem:[%s1 + $0x4b0] sm:$0xf]
    %v496 = vld [vmem:[%s1 + $0x4b4] sm:$0xf]
    %v497 = vld [vmem:[%s1 + $0x4b8] sm:$0xf]
    %v498 = vld [vmem:[%s1 + $0x4bc] sm:$0xf]
    %v499 = vld [vmem:[%s1 + $0x4c0] sm:$0xf]
    %v500 = vld [vmem:[%s1 + $0x4c4] sm:$0xf]
    %v501 = vld [vmem:[%s1 + $0x4c8] sm:$0xf]
    %v502 = vld [vmem:[%s1 + $0x4cc] sm:$0xf]
    %v503 = vld [vmem:[%s1 + $0x4d0] sm:$0xf]
    %v504 = vld [vmem:[%s1 + $0x4d4] sm:$0xf]
    %v505 = vld [vmem:[%s1 + $0x4d8] sm:$0xf]
    %v506 = vld [vmem:[%s1 + $0x4dc] sm:$0xf]
    %v507 = vld [vmem:[%s1 + $0x4e0] sm:$0xf]
    %v508 = vld [vmem:[%s1 + $0x4e4] sm:$0xf]
    %v509 = vld [vmem:[%s1 + $0x4e8] sm:$0xf]
    %v510 = vld [vmem:[%s1 + $0x4ec] sm:$0xf]
    %v511 = vld [vmem:[%s1 + $0x4f0] sm:$0xf]
    %v512 = vld [vmem:[%s1 + $0x4f4] sm:$0xf]
    %v513 = vld [vmem:[%s1 + $0x4f8] sm:$0xf]
    %v514 = vld [vmem:[%s1 + $0x4fc] sm:$0xf]
    %v515 = vld [vmem:[%s1 + $0x500] sm:$0xf]
    %v516 = vld [vmem:[%s1 + $0x504] sm:$0xf]
    %v517 = vld [vmem:[%s1 + $0x508] sm:$0xf]
    %v518 = vld [vmem:[%s1 + $0x50c] sm:$0xf]
    %v519 = vld [vmem:[%s1 + $0x510] sm:$0xf]
    %v520 = vld [vmem:[%s1 + $0x514] sm:$0xf]
    %v521 = vld [vmem:[%s1 + $0x518] sm:$0xf]
    %v522 = vld [vmem:[%s1 + $0x51c] sm:$0xf]
    %v523 = vld [vmem:[%s1 + $0x520] sm:$0xf]
    %v524 = vld [vmem:[%s1 + $0x524] sm:$0xf]
    %v525 = vld [vmem:[%s1 + $0x528] sm:$0xf]
    %v526 = vld [vmem:[%s1 + $0x52c] sm:$0xf]
    %v527 = vld [vmem:[%s1 + $0x530] sm:$0xf]
    %v528 = vld [vmem:[%s1 + $0x534] sm:$0xf]
    %v529 = vld [vmem:[%s1 + $0x538] sm:$0xf]
    %v530 = vld [vmem:[%s1 + $0x53c] sm:$0xf]
    %v531 = vld [vmem:[%s1 + $0x540] sm:$0xf]
    %v532 = vld [vmem:[%s1 + $0x544] sm:$0xf]
    %v533 = vld [vmem:[%s1 + $0x548] sm:$0xf]
    %v534 = vld [vmem:[%s1 + $0x54c] sm:$0xf]
    %v535 = vld [vmem:[%s1 + $0x550] sm:$0xf]
    %v536 = vld [vmem:[%s1 + $0x554] sm:$0xf]
    %v537 = vld [vmem:[%s1 + $0x558] sm:$0xf]
    %v538 = vld [vmem:[%s1 + $0x55c] sm:$0xf]
    %v539 = vld [vmem:[%s1 + $0x560] sm:$0xf]
    %v540 = vld [vmem:[%s1 + $0x564] sm:$0xf]
    %v541 = vld [vmem:[%s1 + $0x568] sm:$0xf]
    %v542 = vld [vmem:[%s1 + $0x56c] sm:$0xf]
    %v543 = vld [vmem:[%s1 + $0x570] sm:$0xf]
    %v544 = vld [vmem:[%s1 + $0x574] sm:$0xf]
    %v545 = vld [vmem:[%s1 + $0x578] sm:$0xf]
    %v546 = vld [vmem:[%s1 + $0x57c] sm:$0xf]
    %v547 = vld [vmem:[%s1 + $0x580] sm:$0xf]
    %v548 = vld [vmem:[%s1 + $0x584] sm:$0xf]
    %v549 = vld [vmem:[%s1 + $0x588] sm:$0xf]
    %v550 = vld [vmem:[%s1 + $0x58c] sm:$0xf]
    %v551 = vld [vmem:[%s1 + $0x590] sm:$0xf]
    %v552 = vld [vmem:[%s1 + $0x594] sm:$0xf]
    %v553 = vld [vmem:[%s1 + $0x598] sm:$0xf]
    %v554 = vld [vmem:[%s1 + $0x59c] sm:$0xf]
    %v555 = vld [vmem:[%s1 + $0x5a0] sm:$0xf]
    %v556 = vld [vmem:[%s1 + $0x5a4] sm:$0xf]
    %v557 = vld [vmem:[%s1 + $0x5a8] sm:$0xf]
    %v558 = vld [vmem:[%s1 + $0x5ac] sm:$0xf]
    %v559 = vld [vmem:[%s1 + $0x5b0] sm:$0xf]
    %v560 = vld [vmem:[%s1 + $0x5b4] sm:$0xf]
    %v561 = vld [vmem:[%s1 + $0x5b8] sm:$0xf]
    %v562 = vld [vmem:[%s1 + $0x5bc] sm:$0xf]
    %v563 = vld [vmem:[%s1 + $0x5c0] sm:$0xf]
    %v564 = vld [vmem:[%s1 + $0x5c4] sm:$0xf]
    %v565 = vld [vmem:[%s1 + $0x5c8] sm:$0xf]
    %v566 = vld [vmem:[%s1 + $0x5cc] sm:$0xf]
    %v567 = vld [vmem:[%s1 + $0x5d0] sm:$0xf]
    %v568 = vld [vmem:[%s1 + $0x5d4] sm:$0xf]
    %v569 = vld [vmem:[%s1 + $0x5d8] sm:$0xf]
    %v570 = vld [vmem:[%s1 + $0x5dc] sm:$0xf]
    %v571 = vld [vmem:[%s1 + $0x5e0] sm:$0xf]
    %v572 = vld [vmem:[%s1 + $0x5e4] sm:$0xf]
    %v573 = vld [vmem:[%s1 + $0x5e8] sm:$0xf]
    %v574 = vld [vmem:[%s1 + $0x5ec] sm:$0xf]
    %v575 = vld [vmem:[%s1 + $0x5f0] sm:$0xf]
    %v576 = vld [vmem:[%s1 + $0x5f4] sm:$0xf]
    %v577 = vld [vmem:[%s1 + $0x5f8] sm:$0xf]
    %v578 = vld [vmem:[%s1 + $0x5fc] sm:$0xf]
    %v579 = vld [vmem:[%s1 + $0x600] sm:$0xf]
    %v580 = vld [vmem:[%s1 + $0x604] sm:$0xf]
    %v581 = vld [vmem:[%s1 + $0x608] sm:$0xf]
    %v582 = vld [vmem:[%s1 + $0x60c] sm:$0xf]
    %v583 = vld [vmem:[%s1 + $0x610] sm:$0xf]
    %v584 = vld [vmem:[%s1 + $0x614] sm:$0xf]
    %v585 = vld [vmem:[%s1 + $0x618] sm:$0xf]
    %v586 = vld [vmem:[%s1 + $0x61c] sm:$0xf]
    %v587 = vld [vmem:[%s2] sm:$0x1]
    %v589 = vlaneseq
    %v590 = vshrl.u32 %v589, 7
    %v591 = vsub.s32 0, %v590
    %v592 = vrot.slane %v587, %v591
    %v986 = vunpack.c.l.b16 %v195
    %v987 = vunpack.c.l.b16 %v196
    %v988 = vunpack.c.l.b16 %v197
    %v989 = vunpack.c.l.b16 %v198
    %v990 = vunpack.c.l.b16 %v199
    %v991 = vunpack.c.l.b16 %v200
    %v992 = vunpack.c.l.b16 %v201
    %v993 = vunpack.c.l.b16 %v202
    %v994 = vunpack.c.l.b16 %v203
    %v995 = vunpack.c.l.b16 %v204
    %v996 = vunpack.c.l.b16 %v205
    %v997 = vunpack.c.l.b16 %v206
    %v998 = vunpack.c.l.b16 %v207
    %v999 = vunpack.c.l.b16 %v208
    %v1000 = vunpack.c.l.b16 %v209
    %v1001 = vunpack.c.l.b16 %v210
    %v1002 = vunpack.c.l.b16 %v211
    %v1003 = vunpack.c.l.b16 %v212
    %v1004 = vunpack.c.l.b16 %v213
    %v1005 = vunpack.c.l.b16 %v214
    %v1006 = vunpack.c.l.b16 %v215
    %v1007 = vunpack.c.l.b16 %v216
    %v1008 = vunpack.c.l.b16 %v217
    %v1009 = vunpack.c.l.b16 %v218
    %v1010 = vunpack.c.l.b16 %v219
    %v1011 = vunpack.c.l.b16 %v220
    %v1012 = vunpack.c.l.b16 %v221
    %v1013 = vunpack.c.l.b16 %v222
    %v1014 = vunpack.c.l.b16 %v223
    %v1015 = vunpack.c.l.b16 %v224
    %v1016 = vunpack.c.l.b16 %v225
    %v1017 = vunpack.c.l.b16 %v226
    %v1018 = vunpack.c.l.b16 %v227
    %v1019 = vunpack.c.l.b16 %v228
    %v1020 = vunpack.c.l.b16 %v229
    %v1021 = vunpack.c.l.b16 %v230
    %v1022 = vunpack.c.l.b16 %v231
    %v1023 = vunpack.c.l.b16 %v232
    %v1024 = vunpack.c.l.b16 %v233
    %v1025 = vunpack.c.l.b16 %v234
    %v1026 = vunpack.c.l.b16 %v235
    %v1027 = vunpack.c.l.b16 %v236
    %v1028 = vunpack.c.l.b16 %v237
    %v1029 = vunpack.c.l.b16 %v238
    %v1030 = vunpack.c.l.b16 %v239
    %v1031 = vunpack.c.l.b16 %v240
    %v1032 = vunpack.c.l.b16 %v241
    %v1033 = vunpack.c.l.b16 %v242
    %v1034 = vunpack.c.l.b16 %v243
    %v1035 = vunpack.c.l.b16 %v244
    %v1036 = vunpack.c.l.b16 %v245
    %v1037 = vunpack.c.l.b16 %v246
    %v1038 = vunpack.c.l.b16 %v247
    %v1039 = vunpack.c.l.b16 %v248
    %v1040 = vunpack.c.l.b16 %v249
    %v1041 = vunpack.c.l.b16 %v250
    %v1042 = vunpack.c.l.b16 %v251
    %v1043 = vunpack.c.l.b16 %v252
    %v1044 = vunpack.c.l.b16 %v253
    %v1045 = vunpack.c.l.b16 %v254
    %v1046 = vunpack.c.l.b16 %v255
    %v1047 = vunpack.c.l.b16 %v256
    %v1048 = vunpack.c.l.b16 %v257
    %v1049 = vunpack.c.l.b16 %v258
    %v1050 = vunpack.c.l.b16 %v259
    %v1051 = vunpack.c.l.b16 %v260
    %v1052 = vunpack.c.l.b16 %v261
    %v1053 = vunpack.c.l.b16 %v262
    %v1054 = vunpack.c.l.b16 %v263
    %v1055 = vunpack.c.l.b16 %v264
    %v1056 = vunpack.c.l.b16 %v265
    %v1057 = vunpack.c.l.b16 %v266
    %v1058 = vunpack.c.l.b16 %v267
    %v1059 = vunpack.c.l.b16 %v268
    %v1060 = vunpack.c.l.b16 %v269
    %v1061 = vunpack.c.l.b16 %v270
    %v1062 = vunpack.c.l.b16 %v271
    %v1063 = vunpack.c.l.b16 %v272
    %v1064 = vunpack.c.l.b16 %v273
    %v1065 = vunpack.c.l.b16 %v274
    %v1066 = vunpack.c.l.b16 %v275
    %v1067 = vunpack.c.l.b16 %v276
    %v1068 = vunpack.c.l.b16 %v277
    %v1069 = vunpack.c.l.b16 %v278
    %v1070 = vunpack.c.l.b16 %v279
    %v1071 = vunpack.c.l.b16 %v280
    %v1072 = vunpack.c.l.b16 %v281
    %v1073 = vunpack.c.l.b16 %v282
    %v1074 = vunpack.c.l.b16 %v283
    %v1075 = vunpack.c.l.b16 %v284
    %v1076 = vunpack.c.l.b16 %v285
    %v1077 = vunpack.c.l.b16 %v286
    %v1078 = vunpack.c.l.b16 %v287
    %v1079 = vunpack.c.l.b16 %v288
    %v1080 = vunpack.c.l.b16 %v289
    %v1081 = vunpack.c.l.b16 %v290
    %v1082 = vunpack.c.l.b16 %v291
    %v1083 = vunpack.c.l.b16 %v292
    %v1084 = vunpack.c.l.b16 %v293
    %v1085 = vunpack.c.l.b16 %v294
    %v1086 = vunpack.c.l.b16 %v295
    %v1087 = vunpack.c.l.b16 %v296
    %v1088 = vunpack.c.l.b16 %v297
    %v1089 = vunpack.c.l.b16 %v298
    %v1090 = vunpack.c.l.b16 %v299
    %v1091 = vunpack.c.l.b16 %v300
    %v1092 = vunpack.c.l.b16 %v301
    %v1093 = vunpack.c.l.b16 %v302
    %v1094 = vunpack.c.l.b16 %v303
    %v1095 = vunpack.c.l.b16 %v304
    %v1096 = vunpack.c.l.b16 %v305
    %v1097 = vunpack.c.l.b16 %v306
    %v1098 = vunpack.c.l.b16 %v307
    %v1099 = vunpack.c.l.b16 %v308
    %v1100 = vunpack.c.l.b16 %v309
    %v1101 = vunpack.c.l.b16 %v310
    %v1102 = vunpack.c.l.b16 %v311
    %v1103 = vunpack.c.l.b16 %v312
    %v1104 = vunpack.c.l.b16 %v313
    %v1105 = vunpack.c.l.b16 %v314
    %v1106 = vunpack.c.l.b16 %v315
    %v1107 = vunpack.c.l.b16 %v316
    %v1108 = vunpack.c.l.b16 %v317
    %v1109 = vunpack.c.l.b16 %v318
    %v1110 = vunpack.c.l.b16 %v319
    %v1111 = vunpack.c.l.b16 %v320
    %v1112 = vunpack.c.l.b16 %v321
    %v1113 = vunpack.c.l.b16 %v322
    %v1114 = vunpack.c.l.b16 %v323
    %v1115 = vunpack.c.l.b16 %v324
    %v1116 = vunpack.c.l.b16 %v325
    %v1117 = vunpack.c.l.b16 %v326
    %v1118 = vunpack.c.l.b16 %v327
    %v1119 = vunpack.c.l.b16 %v328
    %v1120 = vunpack.c.l.b16 %v329
    %v1121 = vunpack.c.l.b16 %v330
    %v1122 = vunpack.c.l.b16 %v331
    %v1123 = vunpack.c.l.b16 %v332
    %v1124 = vunpack.c.l.b16 %v333
    %v1125 = vunpack.c.l.b16 %v334
    %v1126 = vunpack.c.l.b16 %v335
    %v1127 = vunpack.c.l.b16 %v336
    %v1128 = vunpack.c.l.b16 %v337
    %v1129 = vunpack.c.l.b16 %v338
    %v1130 = vunpack.c.l.b16 %v339
    %v1131 = vunpack.c.l.b16 %v340
    %v1132 = vunpack.c.l.b16 %v341
    %v1133 = vunpack.c.l.b16 %v342
    %v1134 = vunpack.c.l.b16 %v343
    %v1135 = vunpack.c.l.b16 %v344
    %v1136 = vunpack.c.l.b16 %v345
    %v1137 = vunpack.c.l.b16 %v346
    %v1138 = vunpack.c.l.b16 %v347
    %v1139 = vunpack.c.l.b16 %v348
    %v1140 = vunpack.c.l.b16 %v349
    %v1141 = vunpack.c.l.b16 %v350
    %v1142 = vunpack.c.l.b16 %v351
    %v1143 = vunpack.c.l.b16 %v352
    %v1144 = vunpack.c.l.b16 %v353
    %v1145 = vunpack.c.l.b16 %v354
    %v1146 = vunpack.c.l.b16 %v355
    %v1147 = vunpack.c.l.b16 %v356
    %v1148 = vunpack.c.l.b16 %v357
    %v1149 = vunpack.c.l.b16 %v358
    %v1150 = vunpack.c.l.b16 %v359
    %v1151 = vunpack.c.l.b16 %v360
    %v1152 = vunpack.c.l.b16 %v361
    %v1153 = vunpack.c.l.b16 %v362
    %v1154 = vunpack.c.l.b16 %v363
    %v1155 = vunpack.c.l.b16 %v364
    %v1156 = vunpack.c.l.b16 %v365
    %v1157 = vunpack.c.l.b16 %v366
    %v1158 = vunpack.c.l.b16 %v367
    %v1159 = vunpack.c.l.b16 %v368
    %v1160 = vunpack.c.l.b16 %v369
    %v1161 = vunpack.c.l.b16 %v370
    %v1162 = vunpack.c.l.b16 %v371
    %v1163 = vunpack.c.l.b16 %v372
    %v1164 = vunpack.c.l.b16 %v373
    %v1165 = vunpack.c.l.b16 %v374
    %v1166 = vunpack.c.l.b16 %v375
    %v1167 = vunpack.c.l.b16 %v376
    %v1168 = vunpack.c.l.b16 %v377
    %v1169 = vunpack.c.l.b16 %v378
    %v1170 = vunpack.c.l.b16 %v379
    %v1171 = vunpack.c.l.b16 %v380
    %v1172 = vunpack.c.l.b16 %v381
    %v1173 = vunpack.c.l.b16 %v382
    %v1174 = vunpack.c.l.b16 %v383
    %v1175 = vunpack.c.l.b16 %v384
    %v1176 = vunpack.c.l.b16 %v385
    %v1177 = vunpack.c.l.b16 %v386
    %v1178 = vunpack.c.l.b16 %v387
    %v1179 = vunpack.c.l.b16 %v388
    %v1180 = vunpack.c.l.b16 %v389
    %v1181 = vunpack.c.l.b16 %v390
    %v1182 = vunpack.c.l.b16 %v391
    %v1183 = vunpack.c.l.b16 %v392
    %v1184 = vunpack.c.l.b16 %v393
    %v1185 = vunpack.c.l.b16 %v394
    %v1186 = vunpack.c.l.b16 %v395
    %v1187 = vunpack.c.l.b16 %v396
    %v1188 = vunpack.c.l.b16 %v397
    %v1189 = vunpack.c.l.b16 %v398
    %v1190 = vunpack.c.l.b16 %v399
    %v1191 = vunpack.c.l.b16 %v400
    %v1192 = vunpack.c.l.b16 %v401
    %v1193 = vunpack.c.l.b16 %v402
    %v1194 = vunpack.c.l.b16 %v403
    %v1195 = vunpack.c.l.b16 %v404
    %v1196 = vunpack.c.l.b16 %v405
    %v1197 = vunpack.c.l.b16 %v406
    %v1198 = vunpack.c.l.b16 %v407
    %v1199 = vunpack.c.l.b16 %v408
    %v1200 = vunpack.c.l.b16 %v409
    %v1201 = vunpack.c.l.b16 %v410
    %v1202 = vunpack.c.l.b16 %v411
    %v1203 = vunpack.c.l.b16 %v412
    %v1204 = vunpack.c.l.b16 %v413
    %v1205 = vunpack.c.l.b16 %v414
    %v1206 = vunpack.c.l.b16 %v415
    %v1207 = vunpack.c.l.b16 %v416
    %v1208 = vunpack.c.l.b16 %v417
    %v1209 = vunpack.c.l.b16 %v418
    %v1210 = vunpack.c.l.b16 %v419
    %v1211 = vunpack.c.l.b16 %v420
    %v1212 = vunpack.c.l.b16 %v421
    %v1213 = vunpack.c.l.b16 %v422
    %v1214 = vunpack.c.l.b16 %v423
    %v1215 = vunpack.c.l.b16 %v424
    %v1216 = vunpack.c.l.b16 %v425
    %v1217 = vunpack.c.l.b16 %v426
    %v1218 = vunpack.c.l.b16 %v427
    %v1219 = vunpack.c.l.b16 %v428
    %v1220 = vunpack.c.l.b16 %v429
    %v1221 = vunpack.c.l.b16 %v430
    %v1222 = vunpack.c.l.b16 %v431
    %v1223 = vunpack.c.l.b16 %v432
    %v1224 = vunpack.c.l.b16 %v433
    %v1225 = vunpack.c.l.b16 %v434
    %v1226 = vunpack.c.l.b16 %v435
    %v1227 = vunpack.c.l.b16 %v436
    %v1228 = vunpack.c.l.b16 %v437
    %v1229 = vunpack.c.l.b16 %v438
    %v1230 = vunpack.c.l.b16 %v439
    %v1231 = vunpack.c.l.b16 %v440
    %v1232 = vunpack.c.l.b16 %v441
    %v1233 = vunpack.c.l.b16 %v442
    %v1234 = vunpack.c.l.b16 %v443
    %v1235 = vunpack.c.l.b16 %v444
    %v1236 = vunpack.c.l.b16 %v445
    %v1237 = vunpack.c.l.b16 %v446
    %v1238 = vunpack.c.l.b16 %v447
    %v1239 = vunpack.c.l.b16 %v448
    %v1240 = vunpack.c.l.b16 %v449
    %v1241 = vunpack.c.l.b16 %v450
    %v1242 = vunpack.c.l.b16 %v451
    %v1243 = vunpack.c.l.b16 %v452
    %v1244 = vunpack.c.l.b16 %v453
    %v1245 = vunpack.c.l.b16 %v454
    %v1246 = vunpack.c.l.b16 %v455
    %v1247 = vunpack.c.l.b16 %v456
    %v1248 = vunpack.c.l.b16 %v457
    %v1249 = vunpack.c.l.b16 %v458
    %v1250 = vunpack.c.l.b16 %v459
    %v1251 = vunpack.c.l.b16 %v460
    %v1252 = vunpack.c.l.b16 %v461
    %v1253 = vunpack.c.l.b16 %v462
    %v1254 = vunpack.c.l.b16 %v463
    %v1255 = vunpack.c.l.b16 %v464
    %v1256 = vunpack.c.l.b16 %v465
    %v1257 = vunpack.c.l.b16 %v466
    %v1258 = vunpack.c.l.b16 %v467
    %v1259 = vunpack.c.l.b16 %v468
    %v1260 = vunpack.c.l.b16 %v469
    %v1261 = vunpack.c.l.b16 %v470
    %v1262 = vunpack.c.l.b16 %v471
    %v1263 = vunpack.c.l.b16 %v472
    %v1264 = vunpack.c.l.b16 %v473
    %v1265 = vunpack.c.l.b16 %v474
    %v1266 = vunpack.c.l.b16 %v475
    %v1267 = vunpack.c.l.b16 %v476
    %v1268 = vunpack.c.l.b16 %v477
    %v1269 = vunpack.c.l.b16 %v478
    %v1270 = vunpack.c.l.b16 %v479
    %v1271 = vunpack.c.l.b16 %v480
    %v1272 = vunpack.c.l.b16 %v481
    %v1273 = vunpack.c.l.b16 %v482
    %v1274 = vunpack.c.l.b16 %v483
    %v1275 = vunpack.c.l.b16 %v484
    %v1276 = vunpack.c.l.b16 %v485
    %v1277 = vunpack.c.l.b16 %v486
    %v1278 = vunpack.c.l.b16 %v487
    %v1279 = vunpack.c.l.b16 %v488
    %v1280 = vunpack.c.l.b16 %v489
    %v1281 = vunpack.c.l.b16 %v490
    %v1282 = vunpack.c.l.b16 %v491
    %v1283 = vunpack.c.l.b16 %v492
    %v1284 = vunpack.c.l.b16 %v493
    %v1285 = vunpack.c.l.b16 %v494
    %v1286 = vunpack.c.l.b16 %v495
    %v1287 = vunpack.c.l.b16 %v496
    %v1288 = vunpack.c.l.b16 %v497
    %v1289 = vunpack.c.l.b16 %v498
    %v1290 = vunpack.c.l.b16 %v499
    %v1291 = vunpack.c.l.b16 %v500
    %v1292 = vunpack.c.l.b16 %v501
    %v1293 = vunpack.c.l.b16 %v502
    %v1294 = vunpack.c.l.b16 %v503
    %v1295 = vunpack.c.l.b16 %v504
    %v1296 = vunpack.c.l.b16 %v505
    %v1297 = vunpack.c.l.b16 %v506
    %v1298 = vunpack.c.l.b16 %v507
    %v1299 = vunpack.c.l.b16 %v508
    %v1300 = vunpack.c.l.b16 %v509
    %v1301 = vunpack.c.l.b16 %v510
    %v1302 = vunpack.c.l.b16 %v511
    %v1303 = vunpack.c.l.b16 %v512
    %v1304 = vunpack.c.l.b16 %v513
    %v1305 = vunpack.c.l.b16 %v514
    %v1306 = vunpack.c.l.b16 %v515
    %v1307 = vunpack.c.l.b16 %v516
    %v1308 = vunpack.c.l.b16 %v517
    %v1309 = vunpack.c.l.b16 %v518
    %v1310 = vunpack.c.l.b16 %v519
    %v1311 = vunpack.c.l.b16 %v520
    %v1312 = vunpack.c.l.b16 %v521
    %v1313 = vunpack.c.l.b16 %v522
    %v1314 = vunpack.c.l.b16 %v523
    %v1315 = vunpack.c.l.b16 %v524
    %v1316 = vunpack.c.l.b16 %v525
    %v1317 = vunpack.c.l.b16 %v526
    %v1318 = vunpack.c.l.b16 %v527
    %v1319 = vunpack.c.l.b16 %v528
    %v1320 = vunpack.c.l.b16 %v529
    %v1321 = vunpack.c.l.b16 %v530
    %v1322 = vunpack.c.l.b16 %v531
    %v1323 = vunpack.c.l.b16 %v532
    %v1324 = vunpack.c.l.b16 %v533
    %v1325 = vunpack.c.l.b16 %v534
    %v1326 = vunpack.c.l.b16 %v535
    %v1327 = vunpack.c.l.b16 %v536
    %v1328 = vunpack.c.l.b16 %v537
    %v1329 = vunpack.c.l.b16 %v538
    %v1330 = vunpack.c.l.b16 %v539
    %v1331 = vunpack.c.l.b16 %v540
    %v1332 = vunpack.c.l.b16 %v541
    %v1333 = vunpack.c.l.b16 %v542
    %v1334 = vunpack.c.l.b16 %v543
    %v1335 = vunpack.c.l.b16 %v544
    %v1336 = vunpack.c.l.b16 %v545
    %v1337 = vunpack.c.l.b16 %v546
    %v1338 = vunpack.c.l.b16 %v547
    %v1339 = vunpack.c.l.b16 %v548
    %v1340 = vunpack.c.l.b16 %v549
    %v1341 = vunpack.c.l.b16 %v550
    %v1342 = vunpack.c.l.b16 %v551
    %v1343 = vunpack.c.l.b16 %v552
    %v1344 = vunpack.c.l.b16 %v553
    %v1345 = vunpack.c.l.b16 %v554
    %v1346 = vunpack.c.l.b16 %v555
    %v1347 = vunpack.c.l.b16 %v556
    %v1348 = vunpack.c.l.b16 %v557
    %v1349 = vunpack.c.l.b16 %v558
    %v1350 = vunpack.c.l.b16 %v559
    %v1351 = vunpack.c.l.b16 %v560
    %v1352 = vunpack.c.l.b16 %v561
    %v1353 = vunpack.c.l.b16 %v562
    %v1354 = vunpack.c.l.b16 %v563
    %v1355 = vunpack.c.l.b16 %v564
    %v1356 = vunpack.c.l.b16 %v565
    %v1357 = vunpack.c.l.b16 %v566
    %v1358 = vunpack.c.l.b16 %v567
    %v1359 = vunpack.c.l.b16 %v568
    %v1360 = vunpack.c.l.b16 %v569
    %v1361 = vunpack.c.l.b16 %v570
    %v1362 = vunpack.c.l.b16 %v571
    %v1363 = vunpack.c.l.b16 %v572
    %v1364 = vunpack.c.l.b16 %v573
    %v1365 = vunpack.c.l.b16 %v574
    %v1366 = vunpack.c.l.b16 %v575
    %v1367 = vunpack.c.l.b16 %v576
    %v1368 = vunpack.c.l.b16 %v577
    %v1369 = vunpack.c.l.b16 %v578
    %v1370 = vunpack.c.l.b16 %v579
    %v1371 = vunpack.c.l.b16 %v580
    %v1372 = vunpack.c.l.b16 %v581
    %v1373 = vunpack.c.l.b16 %v582
    %v1374 = vunpack.c.l.b16 %v583
    %v1375 = vunpack.c.l.b16 %v584
    %v1376 = vunpack.c.l.b16 %v585
    %v1377 = vunpack.c.l.b16 %v586
    %v1378 = vpack.c.b16 %v987, %v986
    %v1379 = vpack.c.b16 %v989, %v988
    %v1380 = vpack.c.b16 %v991, %v990
    %v1381 = vpack.c.b16 %v993, %v992
    %v1382 = vpack.c.b16 %v995, %v994
    %v1383 = vpack.c.b16 %v997, %v996
    %v1384 = vpack.c.b16 %v999, %v998
    %v1385 = vpack.c.b16 %v1001, %v1000
    %v1386 = vpack.c.b16 %v1003, %v1002
    %v1387 = vpack.c.b16 %v1005, %v1004
    %v1388 = vpack.c.b16 %v1007, %v1006
    %v1389 = vpack.c.b16 %v1009, %v1008
    %v1390 = vpack.c.b16 %v1011, %v1010
    %v1391 = vpack.c.b16 %v1013, %v1012
    %v1392 = vpack.c.b16 %v1015, %v1014
    %v1393 = vpack.c.b16 %v1017, %v1016
    %v1394 = vpack.c.b16 %v1019, %v1018
    %v1395 = vpack.c.b16 %v1021, %v1020
    %v1396 = vpack.c.b16 %v1023, %v1022
    %v1397 = vpack.c.b16 %v1025, %v1024
    %v1398 = vpack.c.b16 %v1027, %v1026
    %v1399 = vpack.c.b16 %v1029, %v1028
    %v1400 = vpack.c.b16 %v1031, %v1030
    %v1401 = vpack.c.b16 %v1033, %v1032
    %v1402 = vpack.c.b16 %v1035, %v1034
    %v1403 = vpack.c.b16 %v1037, %v1036
    %v1404 = vpack.c.b16 %v1039, %v1038
    %v1405 = vpack.c.b16 %v1041, %v1040
    %v1406 = vpack.c.b16 %v1043, %v1042
    %v1407 = vpack.c.b16 %v1045, %v1044
    %v1408 = vpack.c.b16 %v1047, %v1046
    %v1409 = vpack.c.b16 %v1049, %v1048
    %v1410 = vpack.c.b16 %v1051, %v1050
    %v1411 = vpack.c.b16 %v1053, %v1052
    %v1412 = vpack.c.b16 %v1055, %v1054
    %v1413 = vpack.c.b16 %v1057, %v1056
    %v1414 = vpack.c.b16 %v1059, %v1058
    %v1415 = vpack.c.b16 %v1061, %v1060
    %v1416 = vpack.c.b16 %v1063, %v1062
    %v1417 = vpack.c.b16 %v1065, %v1064
    %v1418 = vpack.c.b16 %v1067, %v1066
    %v1419 = vpack.c.b16 %v1069, %v1068
    %v1420 = vpack.c.b16 %v1071, %v1070
    %v1421 = vpack.c.b16 %v1073, %v1072
    %v1422 = vpack.c.b16 %v1075, %v1074
    %v1423 = vpack.c.b16 %v1077, %v1076
    %v1424 = vpack.c.b16 %v1079, %v1078
    %v1425 = vpack.c.b16 %v1081, %v1080
    %v1426 = vpack.c.b16 %v1083, %v1082
    %v1427 = vpack.c.b16 %v1085, %v1084
    %v1428 = vpack.c.b16 %v1087, %v1086
    %v1429 = vpack.c.b16 %v1089, %v1088
    %v1430 = vpack.c.b16 %v1091, %v1090
    %v1431 = vpack.c.b16 %v1093, %v1092
    %v1432 = vpack.c.b16 %v1095, %v1094
    %v1433 = vpack.c.b16 %v1097, %v1096
    %v1434 = vpack.c.b16 %v1099, %v1098
    %v1435 = vpack.c.b16 %v1101, %v1100
    %v1436 = vpack.c.b16 %v1103, %v1102
    %v1437 = vpack.c.b16 %v1105, %v1104
    %v1438 = vpack.c.b16 %v1107, %v1106
    %v1439 = vpack.c.b16 %v1109, %v1108
    %v1440 = vpack.c.b16 %v1111, %v1110
    %v1441 = vpack.c.b16 %v1113, %v1112
    %v1442 = vpack.c.b16 %v1115, %v1114
    %v1443 = vpack.c.b16 %v1117, %v1116
    %v1444 = vpack.c.b16 %v1119, %v1118
    %v1445 = vpack.c.b16 %v1121, %v1120
    %v1446 = vpack.c.b16 %v1123, %v1122
    %v1447 = vpack.c.b16 %v1125, %v1124
    %v1448 = vpack.c.b16 %v1127, %v1126
    %v1449 = vpack.c.b16 %v1129, %v1128
    %v1450 = vpack.c.b16 %v1131, %v1130
    %v1451 = vpack.c.b16 %v1133, %v1132
    %v1452 = vpack.c.b16 %v1135, %v1134
    %v1453 = vpack.c.b16 %v1137, %v1136
    %v1454 = vpack.c.b16 %v1139, %v1138
    %v1455 = vpack.c.b16 %v1141, %v1140
    %v1456 = vpack.c.b16 %v1143, %v1142
    %v1457 = vpack.c.b16 %v1145, %v1144
    %v1458 = vpack.c.b16 %v1147, %v1146
    %v1459 = vpack.c.b16 %v1149, %v1148
    %v1460 = vpack.c.b16 %v1151, %v1150
    %v1461 = vpack.c.b16 %v1153, %v1152
    %v1462 = vpack.c.b16 %v1155, %v1154
    %v1463 = vpack.c.b16 %v1157, %v1156
    %v1464 = vpack.c.b16 %v1159, %v1158
    %v1465 = vpack.c.b16 %v1161, %v1160
    %v1466 = vpack.c.b16 %v1163, %v1162
    %v1467 = vpack.c.b16 %v1165, %v1164
    %v1468 = vpack.c.b16 %v1167, %v1166
    %v1469 = vpack.c.b16 %v1169, %v1168
    %v1470 = vpack.c.b16 %v1171, %v1170
    %v1471 = vpack.c.b16 %v1173, %v1172
    %v1472 = vpack.c.b16 %v1175, %v1174
    %v1473 = vpack.c.b16 %v1177, %v1176
    %v1474 = vpack.c.b16 %v1179, %v1178
    %v1475 = vpack.c.b16 %v1181, %v1180
    %v1476 = vpack.c.b16 %v1183, %v1182
    %v1477 = vpack.c.b16 %v1185, %v1184
    %v1478 = vpack.c.b16 %v1187, %v1186
    %v1479 = vpack.c.b16 %v1189, %v1188
    %v1480 = vpack.c.b16 %v1191, %v1190
    %v1481 = vpack.c.b16 %v1193, %v1192
    %v1482 = vpack.c.b16 %v1195, %v1194
    %v1483 = vpack.c.b16 %v1197, %v1196
    %v1484 = vpack.c.b16 %v1199, %v1198
    %v1485 = vpack.c.b16 %v1201, %v1200
    %v1486 = vpack.c.b16 %v1203, %v1202
    %v1487 = vpack.c.b16 %v1205, %v1204
    %v1488 = vpack.c.b16 %v1207, %v1206
    %v1489 = vpack.c.b16 %v1209, %v1208
    %v1490 = vpack.c.b16 %v1211, %v1210
    %v1491 = vpack.c.b16 %v1213, %v1212
    %v1492 = vpack.c.b16 %v1215, %v1214
    %v1493 = vpack.c.b16 %v1217, %v1216
    %v1494 = vpack.c.b16 %v1219, %v1218
    %v1495 = vpack.c.b16 %v1221, %v1220
    %v1496 = vpack.c.b16 %v1223, %v1222
    %v1497 = vpack.c.b16 %v1225, %v1224
    %v1498 = vpack.c.b16 %v1227, %v1226
    %v1499 = vpack.c.b16 %v1229, %v1228
    %v1500 = vpack.c.b16 %v1231, %v1230
    %v1501 = vpack.c.b16 %v1233, %v1232
    %v1502 = vpack.c.b16 %v1235, %v1234
    %v1503 = vpack.c.b16 %v1237, %v1236
    %v1504 = vpack.c.b16 %v1239, %v1238
    %v1505 = vpack.c.b16 %v1241, %v1240
    %v1506 = vpack.c.b16 %v1243, %v1242
    %v1507 = vpack.c.b16 %v1245, %v1244
    %v1508 = vpack.c.b16 %v1247, %v1246
    %v1509 = vpack.c.b16 %v1249, %v1248
    %v1510 = vpack.c.b16 %v1251, %v1250
    %v1511 = vpack.c.b16 %v1253, %v1252
    %v1512 = vpack.c.b16 %v1255, %v1254
    %v1513 = vpack.c.b16 %v1257, %v1256
    %v1514 = vpack.c.b16 %v1259, %v1258
    %v1515 = vpack.c.b16 %v1261, %v1260
    %v1516 = vpack.c.b16 %v1263, %v1262
    %v1517 = vpack.c.b16 %v1265, %v1264
    %v1518 = vpack.c.b16 %v1267, %v1266
    %v1519 = vpack.c.b16 %v1269, %v1268
    %v1520 = vpack.c.b16 %v1271, %v1270
    %v1521 = vpack.c.b16 %v1273, %v1272
    %v1522 = vpack.c.b16 %v1275, %v1274
    %v1523 = vpack.c.b16 %v1277, %v1276
    %v1524 = vpack.c.b16 %v1279, %v1278
    %v1525 = vpack.c.b16 %v1281, %v1280
    %v1526 = vpack.c.b16 %v1283, %v1282
    %v1527 = vpack.c.b16 %v1285, %v1284
    %v1528 = vpack.c.b16 %v1287, %v1286
    %v1529 = vpack.c.b16 %v1289, %v1288
    %v1530 = vpack.c.b16 %v1291, %v1290
    %v1531 = vpack.c.b16 %v1293, %v1292
    %v1532 = vpack.c.b16 %v1295, %v1294
    %v1533 = vpack.c.b16 %v1297, %v1296
    %v1534 = vpack.c.b16 %v1299, %v1298
    %v1535 = vpack.c.b16 %v1301, %v1300
    %v1536 = vpack.c.b16 %v1303, %v1302
    %v1537 = vpack.c.b16 %v1305, %v1304
    %v1538 = vpack.c.b16 %v1307, %v1306
    %v1539 = vpack.c.b16 %v1309, %v1308
    %v1540 = vpack.c.b16 %v1311, %v1310
    %v1541 = vpack.c.b16 %v1313, %v1312
    %v1542 = vpack.c.b16 %v1315, %v1314
    %v1543 = vpack.c.b16 %v1317, %v1316
    %v1544 = vpack.c.b16 %v1319, %v1318
    %v1545 = vpack.c.b16 %v1321, %v1320
    %v1546 = vpack.c.b16 %v1323, %v1322
    %v1547 = vpack.c.b16 %v1325, %v1324
    %v1548 = vpack.c.b16 %v1327, %v1326
    %v1549 = vpack.c.b16 %v1329, %v1328
    %v1550 = vpack.c.b16 %v1331, %v1330
    %v1551 = vpack.c.b16 %v1333, %v1332
    %v1552 = vpack.c.b16 %v1335, %v1334
    %v1553 = vpack.c.b16 %v1337, %v1336
    %v1554 = vpack.c.b16 %v1339, %v1338
    %v1555 = vpack.c.b16 %v1341, %v1340
    %v1556 = vpack.c.b16 %v1343, %v1342
    %v1557 = vpack.c.b16 %v1345, %v1344
    %v1558 = vpack.c.b16 %v1347, %v1346
    %v1559 = vpack.c.b16 %v1349, %v1348
    %v1560 = vpack.c.b16 %v1351, %v1350
    %v1561 = vpack.c.b16 %v1353, %v1352
    %v1562 = vpack.c.b16 %v1355, %v1354
    %v1563 = vpack.c.b16 %v1357, %v1356
    %v1564 = vpack.c.b16 %v1359, %v1358
    %v1565 = vpack.c.b16 %v1361, %v1360
    %v1566 = vpack.c.b16 %v1363, %v1362
    %v1567 = vpack.c.b16 %v1365, %v1364
    %v1568 = vpack.c.b16 %v1367, %v1366
    %v1569 = vpack.c.b16 %v1369, %v1368
    %v1570 = vpack.c.b16 %v1371, %v1370
    %v1571 = vpack.c.b16 %v1373, %v1372
    %v1572 = vpack.c.b16 %v1375, %v1374
    %v1573 = vpack.c.b16 %v1377, %v1376
    %vm1770 = vcmask 523264
    %v1772 = vsel %vm1770, %v194, 0
    %1774 = vmatprep.subr.bf16.mxu0 0
    %1775 = vmatpush1.bf16.msra.mxu0 %v1385
    %1776 = vmatprep.subr.bf16.mxu0 0
    %1777 = vmatpush1.bf16.msra.mxu0 %v1384
    %1778 = vmatprep.subr.bf16.mxu0 0
    %1779 = vmatpush1.bf16.msra.mxu0 %v1383
    %1780 = vmatprep.subr.bf16.mxu0 0
    %1781 = vmatpush1.bf16.msra.mxu0 %v1382
    %1782 = vmatprep.subr.bf16.mxu0 0
    %1783 = vmatpush1.bf16.msra.mxu0 %v1381
    %1784 = vmatprep.subr.bf16.mxu0 0
    %1785 = vmatpush1.bf16.msra.mxu0 %v1380
    %1786 = vmatprep.subr.bf16.mxu0 0
    %1787 = vmatpush1.bf16.msra.mxu0 %v1379
    %1788 = vmatprep.subr.bf16.mxu0 0
    %1789 = vmatpush1.bf16.msra.mxu0 %v1378
    %1790 = vmatprep.subr.bf16.mxu0 0
    %1791 = vmatpush2.bf16.msra.mxu0 %v1393
    %1792 = vmatprep.subr.bf16.mxu0 0
    %1793 = vmatpush2.bf16.msra.mxu0 %v1392
    %1794 = vmatprep.subr.bf16.mxu0 0
    %1795 = vmatpush2.bf16.msra.mxu0 %v1391
    %1796 = vmatprep.subr.bf16.mxu0 0
    %1797 = vmatpush2.bf16.msra.mxu0 %v1390
    %1798 = vmatprep.subr.bf16.mxu0 0
    %1799 = vmatpush2.bf16.msra.mxu0 %v1389
    %1800 = vmatprep.subr.bf16.mxu0 0
    %1801 = vmatpush2.bf16.msra.mxu0 %v1388
    %1802 = vmatprep.subr.bf16.mxu0 0
    %1803 = vmatpush2.bf16.msra.mxu0 %v1387
    %1804 = vmatprep.subr.bf16.mxu0 0
    %1805 = vmatpush2.bf16.msra.mxu0 %v1386
    %1806 = vmatprep.mubr.bf16.mxu0 %v171
    %1807 = vmatmul.mubr.bf16.gmra.mxu0 %v170
    %v1808 = vpop.f32.mrf.mxu0
    %v1809 = vadd.f32 %v592, %v1808
    %v1810 = vpop.f32.mrf.mxu0
    %v1811 = vpop.f32.mrf.mxu0
    %v1812 = vpop.f32.mrf.mxu0
    %1813 = vdwg.mxu0
    %1814 = vmatprep.subr.bf16.mxu0 0
    %1815 = vmatpush1.bf16.msra.mxu0 %v1401
    %1816 = vmatprep.subr.bf16.mxu0 0
    %1817 = vmatpush1.bf16.msra.mxu0 %v1400
    %1818 = vmatprep.subr.bf16.mxu0 0
    %1819 = vmatpush1.bf16.msra.mxu0 %v1399
    %1820 = vmatprep.subr.bf16.mxu0 0
    %1821 = vmatpush1.bf16.msra.mxu0 %v1398
    %1822 = vmatprep.subr.bf16.mxu0 0
    %1823 = vmatpush1.bf16.msra.mxu0 %v1397
    %1824 = vmatprep.subr.bf16.mxu0 0
    %1825 = vmatpush1.bf16.msra.mxu0 %v1396
    %1826 = vmatprep.subr.bf16.mxu0 0
    %1827 = vmatpush1.bf16.msra.mxu0 %v1395
    %1828 = vmatprep.subr.bf16.mxu0 0
    %1829 = vmatpush1.bf16.msra.mxu0 %v1394
    %1830 = vmatprep.subr.bf16.mxu0 0
    %1831 = vmatpush2.bf16.msra.mxu0 %v1409
    %1832 = vmatprep.subr.bf16.mxu0 0
    %1833 = vmatpush2.bf16.msra.mxu0 %v1408
    %1834 = vmatprep.subr.bf16.mxu0 0
    %1835 = vmatpush2.bf16.msra.mxu0 %v1407
    %1836 = vmatprep.subr.bf16.mxu0 0
    %1837 = vmatpush2.bf16.msra.mxu0 %v1406
    %1838 = vmatprep.subr.bf16.mxu0 0
    %1839 = vmatpush2.bf16.msra.mxu0 %v1405
    %1840 = vmatprep.subr.bf16.mxu0 0
    %1841 = vmatpush2.bf16.msra.mxu0 %v1404
    %1842 = vmatprep.subr.bf16.mxu0 0
    %1843 = vmatpush2.bf16.msra.mxu0 %v1403
    %1844 = vmatprep.subr.bf16.mxu0 0
    %1845 = vmatpush2.bf16.msra.mxu0 %v1402
    %1846 = vmatprep.mubr.bf16.mxu0 %v173
    %1847 = vmatmul.mubr.bf16.gmra.mxu0 %v172
    %v1848 = vpop.f32.mrf.mxu0
    %v1849 = vadd.f32 %v1809, %v1848
    %v1850 = vpop.f32.mrf.mxu0
    %v1851 = vpop.f32.mrf.mxu0
    %v1852 = vpop.f32.mrf.mxu0
    %1853 = vdwg.mxu0
    %1854 = vmatprep.subr.bf16.mxu0 0
    %1855 = vmatpush1.bf16.msra.mxu0 %v1417
    %1856 = vmatprep.subr.bf16.mxu0 0
    %1857 = vmatpush1.bf16.msra.mxu0 %v1416
    %1858 = vmatprep.subr.bf16.mxu0 0
    %1859 = vmatpush1.bf16.msra.mxu0 %v1415
    %1860 = vmatprep.subr.bf16.mxu0 0
    %1861 = vmatpush1.bf16.msra.mxu0 %v1414
    %1862 = vmatprep.subr.bf16.mxu0 0
    %1863 = vmatpush1.bf16.msra.mxu0 %v1413
    %1864 = vmatprep.subr.bf16.mxu0 0
    %1865 = vmatpush1.bf16.msra.mxu0 %v1412
    %1866 = vmatprep.subr.bf16.mxu0 0
    %1867 = vmatpush1.bf16.msra.mxu0 %v1411
    %1868 = vmatprep.subr.bf16.mxu0 0
    %1869 = vmatpush1.bf16.msra.mxu0 %v1410
    %1870 = vmatprep.subr.bf16.mxu0 0
    %1871 = vmatpush2.bf16.msra.mxu0 %v1425
    %1872 = vmatprep.subr.bf16.mxu0 0
    %1873 = vmatpush2.bf16.msra.mxu0 %v1424
    %1874 = vmatprep.subr.bf16.mxu0 0
    %1875 = vmatpush2.bf16.msra.mxu0 %v1423
    %1876 = vmatprep.subr.bf16.mxu0 0
    %1877 = vmatpush2.bf16.msra.mxu0 %v1422
    %1878 = vmatprep.subr.bf16.mxu0 0
    %1879 = vmatpush2.bf16.msra.mxu0 %v1421
    %1880 = vmatprep.subr.bf16.mxu0 0
    %1881 = vmatpush2.bf16.msra.mxu0 %v1420
    %1882 = vmatprep.subr.bf16.mxu0 0
    %1883 = vmatpush2.bf16.msra.mxu0 %v1419
    %1884 = vmatprep.subr.bf16.mxu0 0
    %1885 = vmatpush2.bf16.msra.mxu0 %v1418
    %1886 = vmatprep.mubr.bf16.mxu0 %v175
    %1887 = vmatmul.mubr.bf16.gmra.mxu0 %v174
    %v1888 = vpop.f32.mrf.mxu0
    %v1889 = vadd.f32 %v1849, %v1888
    %v1890 = vpop.f32.mrf.mxu0
    %v1891 = vpop.f32.mrf.mxu0
    %v1892 = vpop.f32.mrf.mxu0
    %1893 = vdwg.mxu0
    %1894 = vmatprep.subr.bf16.mxu0 0
    %1895 = vmatpush1.bf16.msra.mxu0 %v1433
    %1896 = vmatprep.subr.bf16.mxu0 0
    %1897 = vmatpush1.bf16.msra.mxu0 %v1432
    %1898 = vmatprep.subr.bf16.mxu0 0
    %1899 = vmatpush1.bf16.msra.mxu0 %v1431
    %1900 = vmatprep.subr.bf16.mxu0 0
    %1901 = vmatpush1.bf16.msra.mxu0 %v1430
    %1902 = vmatprep.subr.bf16.mxu0 0
    %1903 = vmatpush1.bf16.msra.mxu0 %v1429
    %1904 = vmatprep.subr.bf16.mxu0 0
    %1905 = vmatpush1.bf16.msra.mxu0 %v1428
    %1906 = vmatprep.subr.bf16.mxu0 0
    %1907 = vmatpush1.bf16.msra.mxu0 %v1427
    %1908 = vmatprep.subr.bf16.mxu0 0
    %1909 = vmatpush1.bf16.msra.mxu0 %v1426
    %1910 = vmatprep.subr.bf16.mxu0 0
    %1911 = vmatpush2.bf16.msra.mxu0 %v1441
    %1912 = vmatprep.subr.bf16.mxu0 0
    %1913 = vmatpush2.bf16.msra.mxu0 %v1440
    %1914 = vmatprep.subr.bf16.mxu0 0
    %1915 = vmatpush2.bf16.msra.mxu0 %v1439
    %1916 = vmatprep.subr.bf16.mxu0 0
    %1917 = vmatpush2.bf16.msra.mxu0 %v1438
    %1918 = vmatprep.subr.bf16.mxu0 0
    %1919 = vmatpush2.bf16.msra.mxu0 %v1437
    %1920 = vmatprep.subr.bf16.mxu0 0
    %1921 = vmatpush2.bf16.msra.mxu0 %v1436
    %1922 = vmatprep.subr.bf16.mxu0 0
    %1923 = vmatpush2.bf16.msra.mxu0 %v1435
    %1924 = vmatprep.subr.bf16.mxu0 0
    %1925 = vmatpush2.bf16.msra.mxu0 %v1434
    %1926 = vmatprep.mubr.bf16.mxu0 %v177
    %1927 = vmatmul.mubr.bf16.gmra.mxu0 %v176
    %v1928 = vpop.f32.mrf.mxu0
    %v1929 = vadd.f32 %v1889, %v1928
    %v1930 = vpop.f32.mrf.mxu0
    %v1931 = vpop.f32.mrf.mxu0
    %v1932 = vpop.f32.mrf.mxu0
    %1933 = vdwg.mxu0
    %1934 = vmatprep.subr.bf16.mxu0 0
    %1935 = vmatpush1.bf16.msra.mxu0 %v1449
    %1936 = vmatprep.subr.bf16.mxu0 0
    %1937 = vmatpush1.bf16.msra.mxu0 %v1448
    %1938 = vmatprep.subr.bf16.mxu0 0
    %1939 = vmatpush1.bf16.msra.mxu0 %v1447
    %1940 = vmatprep.subr.bf16.mxu0 0
    %1941 = vmatpush1.bf16.msra.mxu0 %v1446
    %1942 = vmatprep.subr.bf16.mxu0 0
    %1943 = vmatpush1.bf16.msra.mxu0 %v1445
    %1944 = vmatprep.subr.bf16.mxu0 0
    %1945 = vmatpush1.bf16.msra.mxu0 %v1444
    %1946 = vmatprep.subr.bf16.mxu0 0
    %1947 = vmatpush1.bf16.msra.mxu0 %v1443
    %1948 = vmatprep.subr.bf16.mxu0 0
    %1949 = vmatpush1.bf16.msra.mxu0 %v1442
    %1950 = vmatprep.subr.bf16.mxu0 0
    %1951 = vmatpush2.bf16.msra.mxu0 %v1457
    %1952 = vmatprep.subr.bf16.mxu0 0
    %1953 = vmatpush2.bf16.msra.mxu0 %v1456
    %1954 = vmatprep.subr.bf16.mxu0 0
    %1955 = vmatpush2.bf16.msra.mxu0 %v1455
    %1956 = vmatprep.subr.bf16.mxu0 0
    %1957 = vmatpush2.bf16.msra.mxu0 %v1454
    %1958 = vmatprep.subr.bf16.mxu0 0
    %1959 = vmatpush2.bf16.msra.mxu0 %v1453
    %1960 = vmatprep.subr.bf16.mxu0 0
    %1961 = vmatpush2.bf16.msra.mxu0 %v1452
    %1962 = vmatprep.subr.bf16.mxu0 0
    %1963 = vmatpush2.bf16.msra.mxu0 %v1451
    %1964 = vmatprep.subr.bf16.mxu0 0
    %1965 = vmatpush2.bf16.msra.mxu0 %v1450
    %1966 = vmatprep.mubr.bf16.mxu0 %v179
    %1967 = vmatmul.mubr.bf16.gmra.mxu0 %v178
    %v1968 = vpop.f32.mrf.mxu0
    %v1969 = vadd.f32 %v1929, %v1968
    %v1970 = vpop.f32.mrf.mxu0
    %v1971 = vpop.f32.mrf.mxu0
    %v1972 = vpop.f32.mrf.mxu0
    %1973 = vdwg.mxu0
    %1974 = vmatprep.subr.bf16.mxu0 0
    %1975 = vmatpush1.bf16.msra.mxu0 %v1465
    %1976 = vmatprep.subr.bf16.mxu0 0
    %1977 = vmatpush1.bf16.msra.mxu0 %v1464
    %1978 = vmatprep.subr.bf16.mxu0 0
    %1979 = vmatpush1.bf16.msra.mxu0 %v1463
    %1980 = vmatprep.subr.bf16.mxu0 0
    %1981 = vmatpush1.bf16.msra.mxu0 %v1462
    %1982 = vmatprep.subr.bf16.mxu0 0
    %1983 = vmatpush1.bf16.msra.mxu0 %v1461
    %1984 = vmatprep.subr.bf16.mxu0 0
    %1985 = vmatpush1.bf16.msra.mxu0 %v1460
    %1986 = vmatprep.subr.bf16.mxu0 0
    %1987 = vmatpush1.bf16.msra.mxu0 %v1459
    %1988 = vmatprep.subr.bf16.mxu0 0
    %1989 = vmatpush1.bf16.msra.mxu0 %v1458
    %1990 = vmatprep.subr.bf16.mxu0 0
    %1991 = vmatpush2.bf16.msra.mxu0 %v1473
    %1992 = vmatprep.subr.bf16.mxu0 0
    %1993 = vmatpush2.bf16.msra.mxu0 %v1472
    %1994 = vmatprep.subr.bf16.mxu0 0
    %1995 = vmatpush2.bf16.msra.mxu0 %v1471
    %1996 = vmatprep.subr.bf16.mxu0 0
    %1997 = vmatpush2.bf16.msra.mxu0 %v1470
    %1998 = vmatprep.subr.bf16.mxu0 0
    %1999 = vmatpush2.bf16.msra.mxu0 %v1469
    %2000 = vmatprep.subr.bf16.mxu0 0
    %2001 = vmatpush2.bf16.msra.mxu0 %v1468
    %2002 = vmatprep.subr.bf16.mxu0 0
    %2003 = vmatpush2.bf16.msra.mxu0 %v1467
    %2004 = vmatprep.subr.bf16.mxu0 0
    %2005 = vmatpush2.bf16.msra.mxu0 %v1466
    %2006 = vmatprep.mubr.bf16.mxu0 %v181
    %2007 = vmatmul.mubr.bf16.gmra.mxu0 %v180
    %v2008 = vpop.f32.mrf.mxu0
    %v2009 = vadd.f32 %v1969, %v2008
    %v2010 = vpop.f32.mrf.mxu0
    %v2011 = vpop.f32.mrf.mxu0
    %v2012 = vpop.f32.mrf.mxu0
    %2013 = vdwg.mxu0
    %2014 = vmatprep.subr.bf16.mxu0 0
    %2015 = vmatpush1.bf16.msra.mxu0 %v1481
    %2016 = vmatprep.subr.bf16.mxu0 0
    %2017 = vmatpush1.bf16.msra.mxu0 %v1480
    %2018 = vmatprep.subr.bf16.mxu0 0
    %2019 = vmatpush1.bf16.msra.mxu0 %v1479
    %2020 = vmatprep.subr.bf16.mxu0 0
    %2021 = vmatpush1.bf16.msra.mxu0 %v1478
    %2022 = vmatprep.subr.bf16.mxu0 0
    %2023 = vmatpush1.bf16.msra.mxu0 %v1477
    %2024 = vmatprep.subr.bf16.mxu0 0
    %2025 = vmatpush1.bf16.msra.mxu0 %v1476
    %2026 = vmatprep.subr.bf16.mxu0 0
    %2027 = vmatpush1.bf16.msra.mxu0 %v1475
    %2028 = vmatprep.subr.bf16.mxu0 0
    %2029 = vmatpush1.bf16.msra.mxu0 %v1474
    %2030 = vmatprep.subr.bf16.mxu0 0
    %2031 = vmatpush2.bf16.msra.mxu0 %v1489
    %2032 = vmatprep.subr.bf16.mxu0 0
    %2033 = vmatpush2.bf16.msra.mxu0 %v1488
    %2034 = vmatprep.subr.bf16.mxu0 0
    %2035 = vmatpush2.bf16.msra.mxu0 %v1487
    %2036 = vmatprep.subr.bf16.mxu0 0
    %2037 = vmatpush2.bf16.msra.mxu0 %v1486
    %2038 = vmatprep.subr.bf16.mxu0 0
    %2039 = vmatpush2.bf16.msra.mxu0 %v1485
    %2040 = vmatprep.subr.bf16.mxu0 0
    %2041 = vmatpush2.bf16.msra.mxu0 %v1484
    %2042 = vmatprep.subr.bf16.mxu0 0
    %2043 = vmatpush2.bf16.msra.mxu0 %v1483
    %2044 = vmatprep.subr.bf16.mxu0 0
    %2045 = vmatpush2.bf16.msra.mxu0 %v1482
    %2046 = vmatprep.mubr.bf16.mxu0 %v183
    %2047 = vmatmul.mubr.bf16.gmra.mxu0 %v182
    %v2048 = vpop.f32.mrf.mxu0
    %v2049 = vadd.f32 %v2009, %v2048
    %v2050 = vpop.f32.mrf.mxu0
    %v2051 = vpop.f32.mrf.mxu0
    %v2052 = vpop.f32.mrf.mxu0
    %2053 = vdwg.mxu0
    %2054 = vmatprep.subr.bf16.mxu0 0
    %2055 = vmatpush1.bf16.msra.mxu0 %v1497
    %2056 = vmatprep.subr.bf16.mxu0 0
    %2057 = vmatpush1.bf16.msra.mxu0 %v1496
    %2058 = vmatprep.subr.bf16.mxu0 0
    %2059 = vmatpush1.bf16.msra.mxu0 %v1495
    %2060 = vmatprep.subr.bf16.mxu0 0
    %2061 = vmatpush1.bf16.msra.mxu0 %v1494
    %2062 = vmatprep.subr.bf16.mxu0 0
    %2063 = vmatpush1.bf16.msra.mxu0 %v1493
    %2064 = vmatprep.subr.bf16.mxu0 0
    %2065 = vmatpush1.bf16.msra.mxu0 %v1492
    %2066 = vmatprep.subr.bf16.mxu0 0
    %2067 = vmatpush1.bf16.msra.mxu0 %v1491
    %2068 = vmatprep.subr.bf16.mxu0 0
    %2069 = vmatpush1.bf16.msra.mxu0 %v1490
    %2070 = vmatprep.subr.bf16.mxu0 0
    %2071 = vmatpush2.bf16.msra.mxu0 %v1505
    %2072 = vmatprep.subr.bf16.mxu0 0
    %2073 = vmatpush2.bf16.msra.mxu0 %v1504
    %2074 = vmatprep.subr.bf16.mxu0 0
    %2075 = vmatpush2.bf16.msra.mxu0 %v1503
    %2076 = vmatprep.subr.bf16.mxu0 0
    %2077 = vmatpush2.bf16.msra.mxu0 %v1502
    %2078 = vmatprep.subr.bf16.mxu0 0
    %2079 = vmatpush2.bf16.msra.mxu0 %v1501
    %2080 = vmatprep.subr.bf16.mxu0 0
    %2081 = vmatpush2.bf16.msra.mxu0 %v1500
    %2082 = vmatprep.subr.bf16.mxu0 0
    %2083 = vmatpush2.bf16.msra.mxu0 %v1499
    %2084 = vmatprep.subr.bf16.mxu0 0
    %2085 = vmatpush2.bf16.msra.mxu0 %v1498
    %2086 = vmatprep.mubr.bf16.mxu0 %v185
    %2087 = vmatmul.mubr.bf16.gmra.mxu0 %v184
    %v2088 = vpop.f32.mrf.mxu0
    %v2089 = vadd.f32 %v2049, %v2088
    %v2090 = vpop.f32.mrf.mxu0
    %v2091 = vpop.f32.mrf.mxu0
    %v2092 = vpop.f32.mrf.mxu0
    %2093 = vdwg.mxu0
    %2094 = vmatprep.subr.bf16.mxu0 0
    %2095 = vmatpush1.bf16.msra.mxu0 %v1513
    %2096 = vmatprep.subr.bf16.mxu0 0
    %2097 = vmatpush1.bf16.msra.mxu0 %v1512
    %2098 = vmatprep.subr.bf16.mxu0 0
    %2099 = vmatpush1.bf16.msra.mxu0 %v1511
    %2100 = vmatprep.subr.bf16.mxu0 0
    %2101 = vmatpush1.bf16.msra.mxu0 %v1510
    %2102 = vmatprep.subr.bf16.mxu0 0
    %2103 = vmatpush1.bf16.msra.mxu0 %v1509
    %2104 = vmatprep.subr.bf16.mxu0 0
    %2105 = vmatpush1.bf16.msra.mxu0 %v1508
    %2106 = vmatprep.subr.bf16.mxu0 0
    %2107 = vmatpush1.bf16.msra.mxu0 %v1507
    %2108 = vmatprep.subr.bf16.mxu0 0
    %2109 = vmatpush1.bf16.msra.mxu0 %v1506
    %2110 = vmatprep.subr.bf16.mxu0 0
    %2111 = vmatpush2.bf16.msra.mxu0 %v1521
    %2112 = vmatprep.subr.bf16.mxu0 0
    %2113 = vmatpush2.bf16.msra.mxu0 %v1520
    %2114 = vmatprep.subr.bf16.mxu0 0
    %2115 = vmatpush2.bf16.msra.mxu0 %v1519
    %2116 = vmatprep.subr.bf16.mxu0 0
    %2117 = vmatpush2.bf16.msra.mxu0 %v1518
    %2118 = vmatprep.subr.bf16.mxu0 0
    %2119 = vmatpush2.bf16.msra.mxu0 %v1517
    %2120 = vmatprep.subr.bf16.mxu0 0
    %2121 = vmatpush2.bf16.msra.mxu0 %v1516
    %2122 = vmatprep.subr.bf16.mxu0 0
    %2123 = vmatpush2.bf16.msra.mxu0 %v1515
    %2124 = vmatprep.subr.bf16.mxu0 0
    %2125 = vmatpush2.bf16.msra.mxu0 %v1514
    %2126 = vmatprep.mubr.bf16.mxu0 %v187
    %2127 = vmatmul.mubr.bf16.gmra.mxu0 %v186
    %v2128 = vpop.f32.mrf.mxu0
    %v2129 = vadd.f32 %v2089, %v2128
    %v2130 = vpop.f32.mrf.mxu0
    %v2131 = vpop.f32.mrf.mxu0
    %v2132 = vpop.f32.mrf.mxu0
    %2133 = vdwg.mxu0
    %2134 = vmatprep.subr.bf16.mxu0 0
    %2135 = vmatpush1.bf16.msra.mxu0 %v1529
    %2136 = vmatprep.subr.bf16.mxu0 0
    %2137 = vmatpush1.bf16.msra.mxu0 %v1528
    %2138 = vmatprep.subr.bf16.mxu0 0
    %2139 = vmatpush1.bf16.msra.mxu0 %v1527
    %2140 = vmatprep.subr.bf16.mxu0 0
    %2141 = vmatpush1.bf16.msra.mxu0 %v1526
    %2142 = vmatprep.subr.bf16.mxu0 0
    %2143 = vmatpush1.bf16.msra.mxu0 %v1525
    %2144 = vmatprep.subr.bf16.mxu0 0
    %2145 = vmatpush1.bf16.msra.mxu0 %v1524
    %2146 = vmatprep.subr.bf16.mxu0 0
    %2147 = vmatpush1.bf16.msra.mxu0 %v1523
    %2148 = vmatprep.subr.bf16.mxu0 0
    %2149 = vmatpush1.bf16.msra.mxu0 %v1522
    %2150 = vmatprep.subr.bf16.mxu0 0
    %2151 = vmatpush2.bf16.msra.mxu0 %v1537
    %2152 = vmatprep.subr.bf16.mxu0 0
    %2153 = vmatpush2.bf16.msra.mxu0 %v1536
    %2154 = vmatprep.subr.bf16.mxu0 0
    %2155 = vmatpush2.bf16.msra.mxu0 %v1535
    %2156 = vmatprep.subr.bf16.mxu0 0
    %2157 = vmatpush2.bf16.msra.mxu0 %v1534
    %2158 = vmatprep.subr.bf16.mxu0 0
    %2159 = vmatpush2.bf16.msra.mxu0 %v1533
    %2160 = vmatprep.subr.bf16.mxu0 0
    %2161 = vmatpush2.bf16.msra.mxu0 %v1532
    %2162 = vmatprep.subr.bf16.mxu0 0
    %2163 = vmatpush2.bf16.msra.mxu0 %v1531
    %2164 = vmatprep.subr.bf16.mxu0 0
    %2165 = vmatpush2.bf16.msra.mxu0 %v1530
    %2166 = vmatprep.mubr.bf16.mxu0 %v189
    %2167 = vmatmul.mubr.bf16.gmra.mxu0 %v188
    %v2168 = vpop.f32.mrf.mxu0
    %v2169 = vadd.f32 %v2129, %v2168
    %v2170 = vpop.f32.mrf.mxu0
    %v2171 = vpop.f32.mrf.mxu0
    %v2172 = vpop.f32.mrf.mxu0
    %2173 = vdwg.mxu0
    %2174 = vmatprep.subr.bf16.mxu0 0
    %2175 = vmatpush1.bf16.msra.mxu0 %v1545
    %2176 = vmatprep.subr.bf16.mxu0 0
    %2177 = vmatpush1.bf16.msra.mxu0 %v1544
    %2178 = vmatprep.subr.bf16.mxu0 0
    %2179 = vmatpush1.bf16.msra.mxu0 %v1543
    %2180 = vmatprep.subr.bf16.mxu0 0
    %2181 = vmatpush1.bf16.msra.mxu0 %v1542
    %2182 = vmatprep.subr.bf16.mxu0 0
    %2183 = vmatpush1.bf16.msra.mxu0 %v1541
    %2184 = vmatprep.subr.bf16.mxu0 0
    %2185 = vmatpush1.bf16.msra.mxu0 %v1540
    %2186 = vmatprep.subr.bf16.mxu0 0
    %2187 = vmatpush1.bf16.msra.mxu0 %v1539
    %2188 = vmatprep.subr.bf16.mxu0 0
    %2189 = vmatpush1.bf16.msra.mxu0 %v1538
    %2190 = vmatprep.subr.bf16.mxu0 0
    %2191 = vmatpush2.bf16.msra.mxu0 %v1553
    %2192 = vmatprep.subr.bf16.mxu0 0
    %2193 = vmatpush2.bf16.msra.mxu0 %v1552
    %2194 = vmatprep.subr.bf16.mxu0 0
    %2195 = vmatpush2.bf16.msra.mxu0 %v1551
    %2196 = vmatprep.subr.bf16.mxu0 0
    %2197 = vmatpush2.bf16.msra.mxu0 %v1550
    %2198 = vmatprep.subr.bf16.mxu0 0
    %2199 = vmatpush2.bf16.msra.mxu0 %v1549
    %2200 = vmatprep.subr.bf16.mxu0 0
    %2201 = vmatpush2.bf16.msra.mxu0 %v1548
    %2202 = vmatprep.subr.bf16.mxu0 0
    %2203 = vmatpush2.bf16.msra.mxu0 %v1547
    %2204 = vmatprep.subr.bf16.mxu0 0
    %2205 = vmatpush2.bf16.msra.mxu0 %v1546
    %2206 = vmatprep.mubr.bf16.mxu0 %v191
    %2207 = vmatmul.mubr.bf16.gmra.mxu0 %v190
    %v2208 = vpop.f32.mrf.mxu0
    %v2209 = vadd.f32 %v2169, %v2208
    %v2210 = vpop.f32.mrf.mxu0
    %v2211 = vpop.f32.mrf.mxu0
    %v2212 = vpop.f32.mrf.mxu0
    %2213 = vdwg.mxu0
    %2214 = vmatprep.subr.bf16.mxu0 0
    %2215 = vmatpush1.bf16.msra.mxu0 %v1561
    %2216 = vmatprep.subr.bf16.mxu0 0
    %2217 = vmatpush1.bf16.msra.mxu0 %v1560
    %2218 = vmatprep.subr.bf16.mxu0 0
    %2219 = vmatpush1.bf16.msra.mxu0 %v1559
    %2220 = vmatprep.subr.bf16.mxu0 0
    %2221 = vmatpush1.bf16.msra.mxu0 %v1558
    %2222 = vmatprep.subr.bf16.mxu0 0
    %2223 = vmatpush1.bf16.msra.mxu0 %v1557
    %2224 = vmatprep.subr.bf16.mxu0 0
    %2225 = vmatpush1.bf16.msra.mxu0 %v1556
    %2226 = vmatprep.subr.bf16.mxu0 0
    %2227 = vmatpush1.bf16.msra.mxu0 %v1555
    %2228 = vmatprep.subr.bf16.mxu0 0
    %2229 = vmatpush1.bf16.msra.mxu0 %v1554
    %2230 = vmatprep.subr.bf16.mxu0 0
    %2231 = vmatpush2.bf16.msra.mxu0 %v1569
    %2232 = vmatprep.subr.bf16.mxu0 0
    %2233 = vmatpush2.bf16.msra.mxu0 %v1568
    %2234 = vmatprep.subr.bf16.mxu0 0
    %2235 = vmatpush2.bf16.msra.mxu0 %v1567
    %2236 = vmatprep.subr.bf16.mxu0 0
    %2237 = vmatpush2.bf16.msra.mxu0 %v1566
    %2238 = vmatprep.subr.bf16.mxu0 0
    %2239 = vmatpush2.bf16.msra.mxu0 %v1565
    %2240 = vmatprep.subr.bf16.mxu0 0
    %2241 = vmatpush2.bf16.msra.mxu0 %v1564
    %2242 = vmatprep.subr.bf16.mxu0 0
    %2243 = vmatpush2.bf16.msra.mxu0 %v1563
    %2244 = vmatprep.subr.bf16.mxu0 0
    %2245 = vmatpush2.bf16.msra.mxu0 %v1562
    %2246 = vmatprep.mubr.bf16.mxu0 %v193
    %2247 = vmatmul.mubr.bf16.gmra.mxu0 %v192
    %v2248 = vpop.f32.mrf.mxu0
    %v2249 = vadd.f32 %v2209, %v2248
    %v2250 = vpop.f32.mrf.mxu0
    %v2251 = vpop.f32.mrf.mxu0
    %v2252 = vpop.f32.mrf.mxu0
    %2253 = vdwg.mxu0
    %2254 = vmatprep.subr.bf16.mxu0 0
    %2255 = vmatpush1.bf16.msra.mxu0 0
    %2256 = vmatprep.subr.bf16.mxu0 0
    %2257 = vmatpush1.bf16.msra.mxu0 0
    %2258 = vmatprep.subr.bf16.mxu0 0
    %2259 = vmatpush1.bf16.msra.mxu0 0
    %2260 = vmatprep.subr.bf16.mxu0 0
    %2261 = vmatpush1.bf16.msra.mxu0 0
    %2262 = vmatprep.subr.bf16.mxu0 0
    %2263 = vmatpush1.bf16.msra.mxu0 %v1573
    %2264 = vmatprep.subr.bf16.mxu0 0
    %2265 = vmatpush1.bf16.msra.mxu0 %v1572
    %2266 = vmatprep.subr.bf16.mxu0 0
    %2267 = vmatpush1.bf16.msra.mxu0 %v1571
    %2268 = vmatprep.subr.bf16.mxu0 0
    %2269 = vmatpush1.bf16.msra.mxu0 %v1570
    %2270 = vmatprep.subr.bf16.mxu0 0
    %2271 = vmatpush2.bf16.msra.mxu0 0
    %2272 = vmatprep.subr.bf16.mxu0 0
    %2273 = vmatpush2.bf16.msra.mxu0 0
    %2274 = vmatprep.subr.bf16.mxu0 0
    %2275 = vmatpush2.bf16.msra.mxu0 0
    %2276 = vmatprep.subr.bf16.mxu0 0
    %2277 = vmatpush2.bf16.msra.mxu0 0
    %2278 = vmatprep.subr.bf16.mxu0 0
    %2279 = vmatpush2.bf16.msra.mxu0 0
    %2280 = vmatprep.subr.bf16.mxu0 0
    %2281 = vmatpush2.bf16.msra.mxu0 0
    %2282 = vmatprep.subr.bf16.mxu0 0
    %2283 = vmatpush2.bf16.msra.mxu0 0
    %2284 = vmatprep.subr.bf16.mxu0 0
    %2285 = vmatpush2.bf16.msra.mxu0 0
    %2286 = vmatprep.mubr.bf16.mxu0 0
    %2287 = vmatmul.mubr.bf16.gmra.mxu0 %v1772
    %v2288 = vpop.f32.mrf.mxu0
    %v2289 = vadd.f32 %v2249, %v2288
    %v2290 = vpop.f32.mrf.mxu0
    %v2291 = vpop.f32.mrf.mxu0
    %v2292 = vpop.f32.mrf.mxu0
    %2293 = vdwg.mxu0
    %v2294 = vmax.f32 %v2289, 0.0
    %v2295 = vld [vmem:[%s3] sm:$0xff]
    %v2296 = vld [vmem:[%s3 + $0x8] sm:$0xff]
    %v2297 = vld [vmem:[%s3 + $0x10] sm:$0xff]
    %v2298 = vld [vmem:[%s3 + $0x18] sm:$0xff]
    %v2299 = vld [vmem:[%s4] sm:$0x1]
    %v2301 = vlaneseq
    %v2302 = vshrl.u32 %v2301, 7
    %v2303 = vsub.s32 0, %v2302
    %v2304 = vrot.slane %v2299, %v2303
    %vm2306 = vcmask 261120
    %v2308 = vsel %vm2306, %v2294, 0
    %2310 = vmatprep.subr.mxu0 0.0
    %2311 = vmatpush1.msra.mxu0 0.0
    %2312 = vmatprep.subr.mxu0 0.0
    %2313 = vmatpush1.msra.mxu0 0.0
    %2314 = vmatprep.subr.mxu0 0.0
    %2315 = vmatpush1.msra.mxu0 0.0
    %2316 = vmatprep.subr.mxu0 0.0
    %2317 = vmatpush1.msra.mxu0 0.0
    %2318 = vmatprep.subr.mxu0 0.0
    %2319 = vmatpush1.msra.mxu0 0.0
    %2320 = vmatprep.subr.mxu0 0.0
    %2321 = vmatpush1.msra.mxu0 0.0
    %2322 = vmatprep.subr.mxu0 0.0
    %2323 = vmatpush1.msra.mxu0 0.0
    %2324 = vmatprep.subr.mxu0 0.0
    %2325 = vmatpush1.msra.mxu0 0.0
    %2326 = vmatprep.subr.mxu0 0.0
    %2327 = vmatpush1.msra.mxu0 0.0
    %2328 = vmatprep.subr.mxu0 0.0
    %2329 = vmatpush1.msra.mxu0 0.0
    %2330 = vmatprep.subr.mxu0 0.0
    %2331 = vmatpush1.msra.mxu0 0.0
    %2332 = vmatprep.subr.mxu0 0.0
    %2333 = vmatpush1.msra.mxu0 0.0
    %2334 = vmatprep.subr.mxu0 0.0
    %2335 = vmatpush1.msra.mxu0 %v2298
    %2336 = vmatprep.subr.mxu0 0.0
    %2337 = vmatpush1.msra.mxu0 %v2297
    %2338 = vmatprep.subr.mxu0 0.0
    %2339 = vmatpush1.msra.mxu0 %v2296
    %2340 = vmatprep.subr.mxu0 0.0
    %2341 = vmatpush1.msra.mxu0 %v2295
    %2342 = vmatprep.subr.mxu0 0.0
    %2343 = vmatpush2.msra.mxu0 0.0
    %2344 = vmatprep.subr.mxu0 0.0
    %2345 = vmatpush2.msra.mxu0 0.0
    %2346 = vmatprep.subr.mxu0 0.0
    %2347 = vmatpush2.msra.mxu0 0.0
    %2348 = vmatprep.subr.mxu0 0.0
    %2349 = vmatpush2.msra.mxu0 0.0
    %2350 = vmatprep.subr.mxu0 0.0
    %2351 = vmatpush2.msra.mxu0 0.0
    %2352 = vmatprep.subr.mxu0 0.0
    %2353 = vmatpush2.msra.mxu0 0.0
    %2354 = vmatprep.subr.mxu0 0.0
    %2355 = vmatpush2.msra.mxu0 0.0
    %2356 = vmatprep.subr.mxu0 0.0
    %2357 = vmatpush2.msra.mxu0 0.0
    %2358 = vmatprep.subr.mxu0 0.0
    %2359 = vmatpush2.msra.mxu0 0.0
    %2360 = vmatprep.subr.mxu0 0.0
    %2361 = vmatpush2.msra.mxu0 0.0
    %2362 = vmatprep.subr.mxu0 0.0
    %2363 = vmatpush2.msra.mxu0 0.0
    %2364 = vmatprep.subr.mxu0 0.0
    %2365 = vmatpush2.msra.mxu0 0.0
    %2366 = vmatprep.subr.mxu0 0.0
    %2367 = vmatpush2.msra.mxu0 0.0
    %2368 = vmatprep.subr.mxu0 0.0
    %2369 = vmatpush2.msra.mxu0 0.0
    %2370 = vmatprep.subr.mxu0 0.0
    %2371 = vmatpush2.msra.mxu0 0.0
    %2372 = vmatprep.subr.mxu0 0.0
    %2373 = vmatpush2.msra.mxu0 0.0
    %2374 = vmatprep.mubr.f32.mxu0 0.0
    %2375 = vmatmul.mubr.f32.gmra.mxu0 %v2308
    %v2376 = vpop.f32.mrf.mxu0
    %v2377 = vadd.f32 %v2304, %v2376
    %v2378 = vpop.f32.mrf.mxu0
    %2379 = vdwg.mxu0
    %2380 = vst [vmem:[#allocation2] sm:$0x3] %v2377
    // Predicated region
    $region22: #{tpu_custom_call.1} parent=1 // pred_check
      _
    $region23: #{tpu_custom_call.1} parent=1 // pred_check_branch
      %2382 = sbr.rel (0) target = $region25
    $region24: #{tpu_custom_call.1} parent=1 // pred_region
      %s2384 = ssub.s32 32, 32
      %2385 = vsyncadd [#allocation3], %s2384
      %s2387 = sshll.u32 [#allocation2], 4
      %s2388 = int_to_ptr.vmem [resolvable:$true] %s2387
      %2390 = dma.vmem_to_hbm [thread:$0]  %s2388, 32, %s5, [#allocation3]
    $region25: #{tpu_custom_call.1} parent=1 // pred_fallthru
      _
    // Predicated region
    $region26: #{tpu_custom_call.1} parent=1 // pred_check
      _
    $region27: #{tpu_custom_call.1} parent=1 // pred_check_branch
      %2392 = sbr.rel (0) target = $region29
    $region28: #{tpu_custom_call.1} parent=1 // pred_region
      %2393 = dma.done [#allocation3], 32
    $region29: #{tpu_custom_call.1} parent=1 // pred_fallthru
      _
    %2394 = vsyncpa [#allocation3], 1

</llo_original>
